<compile_context>
chip_gen: v6e
topology: v6e:2x2x1
jax: 0.10.0
libtpu: 0.0.40
codegen_flags: <defaults>
</compile_context>

<pallas_src>
import jax
import jax.numpy as jnp
from jax.experimental import pallas as pl
from jax.experimental.pallas import tpu as pltpu


# ----------------------------- fused GRU + MLP kernel -----------------------------
def make_fused_kernel(B, T, H):
    def kernel(x_ref, wih_ref, whh_ref, bx_ref, bhn_ref,
               w1_ref, b1_ref, w2_ref, b2_ref, w3_ref, b3_ref, out_ref):
        # x_ref:   (T*B, F)  time-major flattened input (rows t*B .. t*B+B-1 = step t)
        # wih_ref: (F, 3H)   input->hidden weights, columns [r | z | n]
        # whh_ref: (H, 3H)   hidden->hidden weights, columns [r | z | n]
        # bx_ref:  (1, 3H)   b_ih + [b_hr, b_hz, 0]  (pre-combined)
        # bhn_ref: (1, H)    b_hn (must stay inside r * (...))
        # w1/b1, w2/b2, w3/b3: MLP head params
        # out_ref: (B, 2)

        # One big matmul for ALL timesteps' input projections (off the serial chain).
        gx_all = jnp.dot(x_ref[...], wih_ref[...],
                         preferred_element_type=jnp.float32) + bx_ref[...]   # (T*B, 3H)

        whh = whh_ref[...]            # (H, 3H)
        bhn = bhn_ref[...]            # (1, H)

        h = jnp.zeros((B, H), jnp.float32)
        # Fully unrolled: only the single h @ whh dot per step is latency-critical.
        for t in range(T):
            gx_t = gx_all[t * B:(t + 1) * B, :]                               # (B, 3H)
            gh = jnp.dot(h, whh, preferred_element_type=jnp.float32)          # (B, 3H)
            r = jax.nn.sigmoid(gx_t[:, 0:H] + gh[:, 0:H])
            z = jax.nn.sigmoid(gx_t[:, H:2 * H] + gh[:, H:2 * H])
            n = jnp.tanh(gx_t[:, 2 * H:3 * H] + r * (gh[:, 2 * H:3 * H] + bhn))
            h = (1.0 - z) * n + z * h

        # Fused MLP head (avoids a second pallas_call + HBM round-trip of h).
        a1 = jnp.maximum(
            jnp.dot(h, w1_ref[...], preferred_element_type=jnp.float32) + b1_ref[...],
            0.0)
        a2 = jnp.maximum(
            jnp.dot(a1, w2_ref[...], preferred_element_type=jnp.float32) + b2_ref[...],
            0.0)
        out_ref[...] = (
            jnp.dot(a2, w3_ref[...], preferred_element_type=jnp.float32) + b3_ref[...])

    return kernel


# ----------------------------- Full module wrapper -----------------------------
class GRUPallas:
    def __init__(self, in_feats, hid_dim=32, key=None):
        if key is None:
            key = jax.random.PRNGKey(0)
        self.in_feats = in_feats
        self.hid_dim = hid_dim
        H, F = hid_dim, in_feats
        ks = jax.random.split(key, 10)

        def u(k, shape, s):
            return jax.random.uniform(k, shape, jnp.float32, -s, s)

        s_gru = 1.0 / jnp.sqrt(jnp.float32(H))
        # PyTorch nn.GRU param shapes: weight_ih_l0 (3H, F), weight_hh_l0 (3H, H),
        # bias_ih_l0 (3H,), bias_hh_l0 (3H,), gate order [r, z, n].
        w_ih = u(ks[0], (3 * H, F), s_gru)
        w_hh = u(ks[1], (3 * H, H), s_gru)
        b_ih = u(ks[2], (3 * H,), s_gru)
        b_hh = u(ks[3], (3 * H,), s_gru)

        # Pre-transposed / concatenated layouts for the fused kernel.
        self.wih = jnp.transpose(w_ih)                       # (F, 3H) cols [r|z|n]
        self.whh = jnp.transpose(w_hh)                       # (H, 3H) cols [r|z|n]
        # Fold b_ih (all gates) and b_hh (r,z only) into the input-projection bias;
        # b_hn must stay separate because r multiplies (h @ W_hn + b_hn).
        bx = b_ih.at[:2 * H].add(b_hh[:2 * H])
        self.bx = bx.reshape(1, 3 * H)                       # (1, 3H)
        self.bhn = b_hh[2 * H:].reshape(1, H)                # (1, H)

        # MLP head: Linear(H,64) -> ReLU -> Linear(64,32) -> ReLU -> Linear(32,2)
        self.w1 = u(ks[4], (H, 64), 1.0 / jnp.sqrt(jnp.float32(H)))
        self.b1 = u(ks[5], (1, 64), 1.0 / jnp.sqrt(jnp.float32(H)))
        self.w2 = u(ks[6], (64, 32), 1.0 / jnp.sqrt(jnp.float32(64)))
        self.b2 = u(ks[7], (1, 32), 1.0 / jnp.sqrt(jnp.float32(64)))
        self.w3 = u(ks[8], (32, 2), 1.0 / jnp.sqrt(jnp.float32(32)))
        self.b3 = u(ks[9], (1, 2), 1.0 / jnp.sqrt(jnp.float32(32)))

    def __call__(self, x):
        # x: (B, T, F), batch_first like the PyTorch module.
        B, T, F = x.shape
        H = self.hid_dim
        # Time-major flatten so the kernel can do ONE input-projection matmul and
        # take contiguous per-step row slices. This ~1 KB transpose happens once,
        # outside the (single) kernel launch, and is negligible.
        x2d = jnp.transpose(x, (1, 0, 2)).reshape(T * B, F).astype(jnp.float32)

        kernel = make_fused_kernel(B, T, H)
        return pl.pallas_call(
            kernel,
            out_shape=jax.ShapeDtypeStruct((B, 2), jnp.float32),
            in_specs=[pl.BlockSpec(memory_space=pltpu.MemorySpace.VMEM)] * 11,
            out_specs=pl.BlockSpec(memory_space=pltpu.MemorySpace.VMEM),
        )(x2d, self.wih, self.whh, self.bx, self.bhn,
          self.w1, self.b1, self.w2, self.b2, self.w3, self.b3)


if __name__ == "__main__":
    B, T, F, H = 2, 8, 16, 32
    key = jax.random.PRNGKey(0)
    k_x, k_p = jax.random.split(key)
    x = jax.random.normal(k_x, (B, T, F), jnp.float32)

    model = GRUPallas(in_feats=F, hid_dim=H, key=k_p)
    out = model(x)
    out = jax.block_until_ready(out)
    assert out.shape == (B, 2)
    print("KERNEL_OK")
</pallas_src>

<mosaic_0001>
module attributes {stable_mosaic.version = 11 : i64} {
  func.func @kernel(%arg0: memref<16x16xf32, #tpu.memory_space<vmem>>, %arg1: memref<16x96xf32, #tpu.memory_space<vmem>>, %arg2: memref<32x96xf32, #tpu.memory_space<vmem>>, %arg3: memref<1x96xf32, #tpu.memory_space<vmem>>, %arg4: memref<1x32xf32, #tpu.memory_space<vmem>>, %arg5: memref<32x64xf32, #tpu.memory_space<vmem>>, %arg6: memref<1x64xf32, #tpu.memory_space<vmem>>, %arg7: memref<64x32xf32, #tpu.memory_space<vmem>>, %arg8: memref<1x32xf32, #tpu.memory_space<vmem>>, %arg9: memref<32x2xf32, #tpu.memory_space<vmem>>, %arg10: memref<1x2xf32, #tpu.memory_space<vmem>>, %arg11: memref<2x2xf32, #tpu.memory_space<vmem>>) attributes {dimension_semantics = [], scalar_prefetch = 0 : i64, scratch_operands = 0 : i64, tpu.core_type = #tpu.core_type<tc>} {
    %c0 = arith.constant 0 : index
    %c0_0 = arith.constant 0 : index
    %0 = vector.load %arg0[%c0, %c0_0] : memref<16x16xf32, #tpu.memory_space<vmem>>, vector<16x16xf32>
    %c0_1 = arith.constant 0 : index
    %c0_2 = arith.constant 0 : index
    %1 = vector.load %arg1[%c0_1, %c0_2] : memref<16x96xf32, #tpu.memory_space<vmem>>, vector<16x96xf32>
    %cst = arith.constant dense<0.000000e+00> : vector<16x96xf32>
    %2 = tpu.matmul %0, %1, %cst {dimension_numbers = #tpu.dot_dimension_numbers<[1], [0], [0], [1], [0, 0, 1, 1], [], []>} : vector<16x16xf32>, vector<16x96xf32>, vector<16x96xf32> -> vector<16x96xf32>
    %c0_3 = arith.constant 0 : index
    %c0_4 = arith.constant 0 : index
    %3 = vector.load %arg3[%c0_3, %c0_4] : memref<1x96xf32, #tpu.memory_space<vmem>>, vector<1x96xf32>
    %4 = vector.broadcast %3 : vector<1x96xf32> to vector<16x96xf32>
    %5 = arith.addf %2, %4 : vector<16x96xf32>
    %c0_5 = arith.constant 0 : index
    %c0_6 = arith.constant 0 : index
    %6 = vector.load %arg2[%c0_5, %c0_6] : memref<32x96xf32, #tpu.memory_space<vmem>>, vector<32x96xf32>
    %c0_7 = arith.constant 0 : index
    %c0_8 = arith.constant 0 : index
    %7 = vector.load %arg4[%c0_7, %c0_8] : memref<1x32xf32, #tpu.memory_space<vmem>>, vector<1x32xf32>
    %cst_9 = arith.constant 0.000000e+00 : f32
    %8 = vector.broadcast %cst_9 : f32 to vector<2x32xf32>
    %9 = vector.extract_strided_slice %5 {offsets = [0, 0], sizes = [2, 96], strides = [1, 1]} : vector<16x96xf32> to vector<2x96xf32>
    %cst_10 = arith.constant dense<0.000000e+00> : vector<2x96xf32>
    %10 = tpu.matmul %8, %6, %cst_10 {dimension_numbers = #tpu.dot_dimension_numbers<[1], [0], [0], [1], [0, 0, 1, 1], [], []>} : vector<2x32xf32>, vector<32x96xf32>, vector<2x96xf32> -> vector<2x96xf32>
    %11 = vector.extract_strided_slice %9 {offsets = [0, 0], sizes = [2, 32], strides = [1, 1]} : vector<2x96xf32> to vector<2x32xf32>
    %12 = vector.extract_strided_slice %10 {offsets = [0, 0], sizes = [2, 32], strides = [1, 1]} : vector<2x96xf32> to vector<2x32xf32>
    %13 = arith.addf %11, %12 : vector<2x32xf32>
    %14 = arith.negf %13 : vector<2x32xf32>
    %15 = math.exp %14 : vector<2x32xf32>
    %cst_11 = arith.constant 1.000000e+00 : f32
    %16 = vector.broadcast %cst_11 : f32 to vector<2x32xf32>
    %17 = arith.addf %16, %15 : vector<2x32xf32>
    %18 = arith.divf %16, %17 : vector<2x32xf32>
    %19 = vector.extract_strided_slice %9 {offsets = [0, 32], sizes = [2, 32], strides = [1, 1]} : vector<2x96xf32> to vector<2x32xf32>
    %20 = vector.extract_strided_slice %10 {offsets = [0, 32], sizes = [2, 32], strides = [1, 1]} : vector<2x96xf32> to vector<2x32xf32>
    %21 = arith.addf %19, %20 : vector<2x32xf32>
    %22 = arith.negf %21 : vector<2x32xf32>
    %23 = math.exp %22 : vector<2x32xf32>
    %cst_12 = arith.constant 1.000000e+00 : f32
    %24 = vector.broadcast %cst_12 : f32 to vector<2x32xf32>
    %25 = arith.addf %24, %23 : vector<2x32xf32>
    %26 = arith.divf %24, %25 : vector<2x32xf32>
    %27 = vector.extract_strided_slice %9 {offsets = [0, 64], sizes = [2, 32], strides = [1, 1]} : vector<2x96xf32> to vector<2x32xf32>
    %28 = vector.extract_strided_slice %10 {offsets = [0, 64], sizes = [2, 32], strides = [1, 1]} : vector<2x96xf32> to vector<2x32xf32>
    %29 = vector.broadcast %7 : vector<1x32xf32> to vector<2x32xf32>
    %30 = arith.addf %28, %29 : vector<2x32xf32>
    %31 = arith.mulf %18, %30 : vector<2x32xf32>
    %32 = arith.addf %27, %31 : vector<2x32xf32>
    %33 = math.tanh %32 : vector<2x32xf32>
    %cst_13 = arith.constant 1.000000e+00 : f32
    %34 = vector.broadcast %cst_13 : f32 to vector<2x32xf32>
    %35 = arith.subf %34, %26 : vector<2x32xf32>
    %36 = arith.mulf %35, %33 : vector<2x32xf32>
    %37 = arith.mulf %26, %8 : vector<2x32xf32>
    %38 = arith.addf %36, %37 : vector<2x32xf32>
    %39 = vector.extract_strided_slice %5 {offsets = [2, 0], sizes = [2, 96], strides = [1, 1]} : vector<16x96xf32> to vector<2x96xf32>
    %cst_14 = arith.constant dense<0.000000e+00> : vector<2x96xf32>
    %40 = tpu.matmul %38, %6, %cst_14 {dimension_numbers = #tpu.dot_dimension_numbers<[1], [0], [0], [1], [0, 0, 1, 1], [], []>} : vector<2x32xf32>, vector<32x96xf32>, vector<2x96xf32> -> vector<2x96xf32>
    %41 = vector.extract_strided_slice %39 {offsets = [0, 0], sizes = [2, 32], strides = [1, 1]} : vector<2x96xf32> to vector<2x32xf32>
    %42 = vector.extract_strided_slice %40 {offsets = [0, 0], sizes = [2, 32], strides = [1, 1]} : vector<2x96xf32> to vector<2x32xf32>
    %43 = arith.addf %41, %42 : vector<2x32xf32>
    %44 = arith.negf %43 : vector<2x32xf32>
    %45 = math.exp %44 : vector<2x32xf32>
    %cst_15 = arith.constant 1.000000e+00 : f32
    %46 = vector.broadcast %cst_15 : f32 to vector<2x32xf32>
    %47 = arith.addf %46, %45 : vector<2x32xf32>
    %48 = arith.divf %46, %47 : vector<2x32xf32>
    %49 = vector.extract_strided_slice %39 {offsets = [0, 32], sizes = [2, 32], strides = [1, 1]} : vector<2x96xf32> to vector<2x32xf32>
    %50 = vector.extract_strided_slice %40 {offsets = [0, 32], sizes = [2, 32], strides = [1, 1]} : vector<2x96xf32> to vector<2x32xf32>
    %51 = arith.addf %49, %50 : vector<2x32xf32>
    %52 = arith.negf %51 : vector<2x32xf32>
    %53 = math.exp %52 : vector<2x32xf32>
    %cst_16 = arith.constant 1.000000e+00 : f32
    %54 = vector.broadcast %cst_16 : f32 to vector<2x32xf32>
    %55 = arith.addf %54, %53 : vector<2x32xf32>
    %56 = arith.divf %54, %55 : vector<2x32xf32>
    %57 = vector.extract_strided_slice %39 {offsets = [0, 64], sizes = [2, 32], strides = [1, 1]} : vector<2x96xf32> to vector<2x32xf32>
    %58 = vector.extract_strided_slice %40 {offsets = [0, 64], sizes = [2, 32], strides = [1, 1]} : vector<2x96xf32> to vector<2x32xf32>
    %59 = vector.broadcast %7 : vector<1x32xf32> to vector<2x32xf32>
    %60 = arith.addf %58, %59 : vector<2x32xf32>
    %61 = arith.mulf %48, %60 : vector<2x32xf32>
    %62 = arith.addf %57, %61 : vector<2x32xf32>
    %63 = math.tanh %62 : vector<2x32xf32>
    %cst_17 = arith.constant 1.000000e+00 : f32
    %64 = vector.broadcast %cst_17 : f32 to vector<2x32xf32>
    %65 = arith.subf %64, %56 : vector<2x32xf32>
    %66 = arith.mulf %65, %63 : vector<2x32xf32>
    %67 = arith.mulf %56, %38 : vector<2x32xf32>
    %68 = arith.addf %66, %67 : vector<2x32xf32>
    %69 = vector.extract_strided_slice %5 {offsets = [4, 0], sizes = [2, 96], strides = [1, 1]} : vector<16x96xf32> to vector<2x96xf32>
    %cst_18 = arith.constant dense<0.000000e+00> : vector<2x96xf32>
    %70 = tpu.matmul %68, %6, %cst_18 {dimension_numbers = #tpu.dot_dimension_numbers<[1], [0], [0], [1], [0, 0, 1, 1], [], []>} : vector<2x32xf32>, vector<32x96xf32>, vector<2x96xf32> -> vector<2x96xf32>
    %71 = vector.extract_strided_slice %69 {offsets = [0, 0], sizes = [2, 32], strides = [1, 1]} : vector<2x96xf32> to vector<2x32xf32>
    %72 = vector.extract_strided_slice %70 {offsets = [0, 0], sizes = [2, 32], strides = [1, 1]} : vector<2x96xf32> to vector<2x32xf32>
    %73 = arith.addf %71, %72 : vector<2x32xf32>
    %74 = arith.negf %73 : vector<2x32xf32>
    %75 = math.exp %74 : vector<2x32xf32>
    %cst_19 = arith.constant 1.000000e+00 : f32
    %76 = vector.broadcast %cst_19 : f32 to vector<2x32xf32>
    %77 = arith.addf %76, %75 : vector<2x32xf32>
    %78 = arith.divf %76, %77 : vector<2x32xf32>
    %79 = vector.extract_strided_slice %69 {offsets = [0, 32], sizes = [2, 32], strides = [1, 1]} : vector<2x96xf32> to vector<2x32xf32>
    %80 = vector.extract_strided_slice %70 {offsets = [0, 32], sizes = [2, 32], strides = [1, 1]} : vector<2x96xf32> to vector<2x32xf32>
    %81 = arith.addf %79, %80 : vector<2x32xf32>
    %82 = arith.negf %81 : vector<2x32xf32>
    %83 = math.exp %82 : vector<2x32xf32>
    %cst_20 = arith.constant 1.000000e+00 : f32
    %84 = vector.broadcast %cst_20 : f32 to vector<2x32xf32>
    %85 = arith.addf %84, %83 : vector<2x32xf32>
    %86 = arith.divf %84, %85 : vector<2x32xf32>
    %87 = vector.extract_strided_slice %69 {offsets = [0, 64], sizes = [2, 32], strides = [1, 1]} : vector<2x96xf32> to vector<2x32xf32>
    %88 = vector.extract_strided_slice %70 {offsets = [0, 64], sizes = [2, 32], strides = [1, 1]} : vector<2x96xf32> to vector<2x32xf32>
    %89 = vector.broadcast %7 : vector<1x32xf32> to vector<2x32xf32>
    %90 = arith.addf %88, %89 : vector<2x32xf32>
    %91 = arith.mulf %78, %90 : vector<2x32xf32>
    %92 = arith.addf %87, %91 : vector<2x32xf32>
    %93 = math.tanh %92 : vector<2x32xf32>
    %cst_21 = arith.constant 1.000000e+00 : f32
    %94 = vector.broadcast %cst_21 : f32 to vector<2x32xf32>
    %95 = arith.subf %94, %86 : vector<2x32xf32>
    %96 = arith.mulf %95, %93 : vector<2x32xf32>
    %97 = arith.mulf %86, %68 : vector<2x32xf32>
    %98 = arith.addf %96, %97 : vector<2x32xf32>
    %99 = vector.extract_strided_slice %5 {offsets = [6, 0], sizes = [2, 96], strides = [1, 1]} : vector<16x96xf32> to vector<2x96xf32>
    %cst_22 = arith.constant dense<0.000000e+00> : vector<2x96xf32>
    %100 = tpu.matmul %98, %6, %cst_22 {dimension_numbers = #tpu.dot_dimension_numbers<[1], [0], [0], [1], [0, 0, 1, 1], [], []>} : vector<2x32xf32>, vector<32x96xf32>, vector<2x96xf32> -> vector<2x96xf32>
    %101 = vector.extract_strided_slice %99 {offsets = [0, 0], sizes = [2, 32], strides = [1, 1]} : vector<2x96xf32> to vector<2x32xf32>
    %102 = vector.extract_strided_slice %100 {offsets = [0, 0], sizes = [2, 32], strides = [1, 1]} : vector<2x96xf32> to vector<2x32xf32>
    %103 = arith.addf %101, %102 : vector<2x32xf32>
    %104 = arith.negf %103 : vector<2x32xf32>
    %105 = math.exp %104 : vector<2x32xf32>
    %cst_23 = arith.constant 1.000000e+00 : f32
    %106 = vector.broadcast %cst_23 : f32 to vector<2x32xf32>
    %107 = arith.addf %106, %105 : vector<2x32xf32>
    %108 = arith.divf %106, %107 : vector<2x32xf32>
    %109 = vector.extract_strided_slice %99 {offsets = [0, 32], sizes = [2, 32], strides = [1, 1]} : vector<2x96xf32> to vector<2x32xf32>
    %110 = vector.extract_strided_slice %100 {offsets = [0, 32], sizes = [2, 32], strides = [1, 1]} : vector<2x96xf32> to vector<2x32xf32>
    %111 = arith.addf %109, %110 : vector<2x32xf32>
    %112 = arith.negf %111 : vector<2x32xf32>
    %113 = math.exp %112 : vector<2x32xf32>
    %cst_24 = arith.constant 1.000000e+00 : f32
    %114 = vector.broadcast %cst_24 : f32 to vector<2x32xf32>
    %115 = arith.addf %114, %113 : vector<2x32xf32>
    %116 = arith.divf %114, %115 : vector<2x32xf32>
    %117 = vector.extract_strided_slice %99 {offsets = [0, 64], sizes = [2, 32], strides = [1, 1]} : vector<2x96xf32> to vector<2x32xf32>
    %118 = vector.extract_strided_slice %100 {offsets = [0, 64], sizes = [2, 32], strides = [1, 1]} : vector<2x96xf32> to vector<2x32xf32>
    %119 = vector.broadcast %7 : vector<1x32xf32> to vector<2x32xf32>
    %120 = arith.addf %118, %119 : vector<2x32xf32>
    %121 = arith.mulf %108, %120 : vector<2x32xf32>
    %122 = arith.addf %117, %121 : vector<2x32xf32>
    %123 = math.tanh %122 : vector<2x32xf32>
    %cst_25 = arith.constant 1.000000e+00 : f32
    %124 = vector.broadcast %cst_25 : f32 to vector<2x32xf32>
    %125 = arith.subf %124, %116 : vector<2x32xf32>
    %126 = arith.mulf %125, %123 : vector<2x32xf32>
    %127 = arith.mulf %116, %98 : vector<2x32xf32>
    %128 = arith.addf %126, %127 : vector<2x32xf32>
    %129 = vector.extract_strided_slice %5 {offsets = [8, 0], sizes = [2, 96], strides = [1, 1]} : vector<16x96xf32> to vector<2x96xf32>
    %cst_26 = arith.constant dense<0.000000e+00> : vector<2x96xf32>
    %130 = tpu.matmul %128, %6, %cst_26 {dimension_numbers = #tpu.dot_dimension_numbers<[1], [0], [0], [1], [0, 0, 1, 1], [], []>} : vector<2x32xf32>, vector<32x96xf32>, vector<2x96xf32> -> vector<2x96xf32>
    %131 = vector.extract_strided_slice %129 {offsets = [0, 0], sizes = [2, 32], strides = [1, 1]} : vector<2x96xf32> to vector<2x32xf32>
    %132 = vector.extract_strided_slice %130 {offsets = [0, 0], sizes = [2, 32], strides = [1, 1]} : vector<2x96xf32> to vector<2x32xf32>
    %133 = arith.addf %131, %132 : vector<2x32xf32>
    %134 = arith.negf %133 : vector<2x32xf32>
    %135 = math.exp %134 : vector<2x32xf32>
    %cst_27 = arith.constant 1.000000e+00 : f32
    %136 = vector.broadcast %cst_27 : f32 to vector<2x32xf32>
    %137 = arith.addf %136, %135 : vector<2x32xf32>
    %138 = arith.divf %136, %137 : vector<2x32xf32>
    %139 = vector.extract_strided_slice %129 {offsets = [0, 32], sizes = [2, 32], strides = [1, 1]} : vector<2x96xf32> to vector<2x32xf32>
    %140 = vector.extract_strided_slice %130 {offsets = [0, 32], sizes = [2, 32], strides = [1, 1]} : vector<2x96xf32> to vector<2x32xf32>
    %141 = arith.addf %139, %140 : vector<2x32xf32>
    %142 = arith.negf %141 : vector<2x32xf32>
    %143 = math.exp %142 : vector<2x32xf32>
    %cst_28 = arith.constant 1.000000e+00 : f32
    %144 = vector.broadcast %cst_28 : f32 to vector<2x32xf32>
    %145 = arith.addf %144, %143 : vector<2x32xf32>
    %146 = arith.divf %144, %145 : vector<2x32xf32>
    %147 = vector.extract_strided_slice %129 {offsets = [0, 64], sizes = [2, 32], strides = [1, 1]} : vector<2x96xf32> to vector<2x32xf32>
    %148 = vector.extract_strided_slice %130 {offsets = [0, 64], sizes = [2, 32], strides = [1, 1]} : vector<2x96xf32> to vector<2x32xf32>
    %149 = vector.broadcast %7 : vector<1x32xf32> to vector<2x32xf32>
    %150 = arith.addf %148, %149 : vector<2x32xf32>
    %151 = arith.mulf %138, %150 : vector<2x32xf32>
    %152 = arith.addf %147, %151 : vector<2x32xf32>
    %153 = math.tanh %152 : vector<2x32xf32>
    %cst_29 = arith.constant 1.000000e+00 : f32
    %154 = vector.broadcast %cst_29 : f32 to vector<2x32xf32>
    %155 = arith.subf %154, %146 : vector<2x32xf32>
    %156 = arith.mulf %155, %153 : vector<2x32xf32>
    %157 = arith.mulf %146, %128 : vector<2x32xf32>
    %158 = arith.addf %156, %157 : vector<2x32xf32>
    %159 = vector.extract_strided_slice %5 {offsets = [10, 0], sizes = [2, 96], strides = [1, 1]} : vector<16x96xf32> to vector<2x96xf32>
    %cst_30 = arith.constant dense<0.000000e+00> : vector<2x96xf32>
    %160 = tpu.matmul %158, %6, %cst_30 {dimension_numbers = #tpu.dot_dimension_numbers<[1], [0], [0], [1], [0, 0, 1, 1], [], []>} : vector<2x32xf32>, vector<32x96xf32>, vector<2x96xf32> -> vector<2x96xf32>
    %161 = vector.extract_strided_slice %159 {offsets = [0, 0], sizes = [2, 32], strides = [1, 1]} : vector<2x96xf32> to vector<2x32xf32>
    %162 = vector.extract_strided_slice %160 {offsets = [0, 0], sizes = [2, 32], strides = [1, 1]} : vector<2x96xf32> to vector<2x32xf32>
    %163 = arith.addf %161, %162 : vector<2x32xf32>
    %164 = arith.negf %163 : vector<2x32xf32>
    %165 = math.exp %164 : vector<2x32xf32>
    %cst_31 = arith.constant 1.000000e+00 : f32
    %166 = vector.broadcast %cst_31 : f32 to vector<2x32xf32>
    %167 = arith.addf %166, %165 : vector<2x32xf32>
    %168 = arith.divf %166, %167 : vector<2x32xf32>
    %169 = vector.extract_strided_slice %159 {offsets = [0, 32], sizes = [2, 32], strides = [1, 1]} : vector<2x96xf32> to vector<2x32xf32>
    %170 = vector.extract_strided_slice %160 {offsets = [0, 32], sizes = [2, 32], strides = [1, 1]} : vector<2x96xf32> to vector<2x32xf32>
    %171 = arith.addf %169, %170 : vector<2x32xf32>
    %172 = arith.negf %171 : vector<2x32xf32>
    %173 = math.exp %172 : vector<2x32xf32>
    %cst_32 = arith.constant 1.000000e+00 : f32
    %174 = vector.broadcast %cst_32 : f32 to vector<2x32xf32>
    %175 = arith.addf %174, %173 : vector<2x32xf32>
    %176 = arith.divf %174, %175 : vector<2x32xf32>
    %177 = vector.extract_strided_slice %159 {offsets = [0, 64], sizes = [2, 32], strides = [1, 1]} : vector<2x96xf32> to vector<2x32xf32>
    %178 = vector.extract_strided_slice %160 {offsets = [0, 64], sizes = [2, 32], strides = [1, 1]} : vector<2x96xf32> to vector<2x32xf32>
    %179 = vector.broadcast %7 : vector<1x32xf32> to vector<2x32xf32>
    %180 = arith.addf %178, %179 : vector<2x32xf32>
    %181 = arith.mulf %168, %180 : vector<2x32xf32>
    %182 = arith.addf %177, %181 : vector<2x32xf32>
    %183 = math.tanh %182 : vector<2x32xf32>
    %cst_33 = arith.constant 1.000000e+00 : f32
    %184 = vector.broadcast %cst_33 : f32 to vector<2x32xf32>
    %185 = arith.subf %184, %176 : vector<2x32xf32>
    %186 = arith.mulf %185, %183 : vector<2x32xf32>
    %187 = arith.mulf %176, %158 : vector<2x32xf32>
    %188 = arith.addf %186, %187 : vector<2x32xf32>
    %189 = vector.extract_strided_slice %5 {offsets = [12, 0], sizes = [2, 96], strides = [1, 1]} : vector<16x96xf32> to vector<2x96xf32>
    %cst_34 = arith.constant dense<0.000000e+00> : vector<2x96xf32>
    %190 = tpu.matmul %188, %6, %cst_34 {dimension_numbers = #tpu.dot_dimension_numbers<[1], [0], [0], [1], [0, 0, 1, 1], [], []>} : vector<2x32xf32>, vector<32x96xf32>, vector<2x96xf32> -> vector<2x96xf32>
    %191 = vector.extract_strided_slice %189 {offsets = [0, 0], sizes = [2, 32], strides = [1, 1]} : vector<2x96xf32> to vector<2x32xf32>
    %192 = vector.extract_strided_slice %190 {offsets = [0, 0], sizes = [2, 32], strides = [1, 1]} : vector<2x96xf32> to vector<2x32xf32>
    %193 = arith.addf %191, %192 : vector<2x32xf32>
    %194 = arith.negf %193 : vector<2x32xf32>
    %195 = math.exp %194 : vector<2x32xf32>
    %cst_35 = arith.constant 1.000000e+00 : f32
    %196 = vector.broadcast %cst_35 : f32 to vector<2x32xf32>
    %197 = arith.addf %196, %195 : vector<2x32xf32>
    %198 = arith.divf %196, %197 : vector<2x32xf32>
    %199 = vector.extract_strided_slice %189 {offsets = [0, 32], sizes = [2, 32], strides = [1, 1]} : vector<2x96xf32> to vector<2x32xf32>
    %200 = vector.extract_strided_slice %190 {offsets = [0, 32], sizes = [2, 32], strides = [1, 1]} : vector<2x96xf32> to vector<2x32xf32>
    %201 = arith.addf %199, %200 : vector<2x32xf32>
    %202 = arith.negf %201 : vector<2x32xf32>
    %203 = math.exp %202 : vector<2x32xf32>
    %cst_36 = arith.constant 1.000000e+00 : f32
    %204 = vector.broadcast %cst_36 : f32 to vector<2x32xf32>
    %205 = arith.addf %204, %203 : vector<2x32xf32>
    %206 = arith.divf %204, %205 : vector<2x32xf32>
    %207 = vector.extract_strided_slice %189 {offsets = [0, 64], sizes = [2, 32], strides = [1, 1]} : vector<2x96xf32> to vector<2x32xf32>
    %208 = vector.extract_strided_slice %190 {offsets = [0, 64], sizes = [2, 32], strides = [1, 1]} : vector<2x96xf32> to vector<2x32xf32>
    %209 = vector.broadcast %7 : vector<1x32xf32> to vector<2x32xf32>
    %210 = arith.addf %208, %209 : vector<2x32xf32>
    %211 = arith.mulf %198, %210 : vector<2x32xf32>
    %212 = arith.addf %207, %211 : vector<2x32xf32>
    %213 = math.tanh %212 : vector<2x32xf32>
    %cst_37 = arith.constant 1.000000e+00 : f32
    %214 = vector.broadcast %cst_37 : f32 to vector<2x32xf32>
    %215 = arith.subf %214, %206 : vector<2x32xf32>
    %216 = arith.mulf %215, %213 : vector<2x32xf32>
    %217 = arith.mulf %206, %188 : vector<2x32xf32>
    %218 = arith.addf %216, %217 : vector<2x32xf32>
    %219 = vector.extract_strided_slice %5 {offsets = [14, 0], sizes = [2, 96], strides = [1, 1]} : vector<16x96xf32> to vector<2x96xf32>
    %cst_38 = arith.constant dense<0.000000e+00> : vector<2x96xf32>
    %220 = tpu.matmul %218, %6, %cst_38 {dimension_numbers = #tpu.dot_dimension_numbers<[1], [0], [0], [1], [0, 0, 1, 1], [], []>} : vector<2x32xf32>, vector<32x96xf32>, vector<2x96xf32> -> vector<2x96xf32>
    %221 = vector.extract_strided_slice %219 {offsets = [0, 0], sizes = [2, 32], strides = [1, 1]} : vector<2x96xf32> to vector<2x32xf32>
    %222 = vector.extract_strided_slice %220 {offsets = [0, 0], sizes = [2, 32], strides = [1, 1]} : vector<2x96xf32> to vector<2x32xf32>
    %223 = arith.addf %221, %222 : vector<2x32xf32>
    %224 = arith.negf %223 : vector<2x32xf32>
    %225 = math.exp %224 : vector<2x32xf32>
    %cst_39 = arith.constant 1.000000e+00 : f32
    %226 = vector.broadcast %cst_39 : f32 to vector<2x32xf32>
    %227 = arith.addf %226, %225 : vector<2x32xf32>
    %228 = arith.divf %226, %227 : vector<2x32xf32>
    %229 = vector.extract_strided_slice %219 {offsets = [0, 32], sizes = [2, 32], strides = [1, 1]} : vector<2x96xf32> to vector<2x32xf32>
    %230 = vector.extract_strided_slice %220 {offsets = [0, 32], sizes = [2, 32], strides = [1, 1]} : vector<2x96xf32> to vector<2x32xf32>
    %231 = arith.addf %229, %230 : vector<2x32xf32>
    %232 = arith.negf %231 : vector<2x32xf32>
    %233 = math.exp %232 : vector<2x32xf32>
    %cst_40 = arith.constant 1.000000e+00 : f32
    %234 = vector.broadcast %cst_40 : f32 to vector<2x32xf32>
    %235 = arith.addf %234, %233 : vector<2x32xf32>
    %236 = arith.divf %234, %235 : vector<2x32xf32>
    %237 = vector.extract_strided_slice %219 {offsets = [0, 64], sizes = [2, 32], strides = [1, 1]} : vector<2x96xf32> to vector<2x32xf32>
    %238 = vector.extract_strided_slice %220 {offsets = [0, 64], sizes = [2, 32], strides = [1, 1]} : vector<2x96xf32> to vector<2x32xf32>
    %239 = vector.broadcast %7 : vector<1x32xf32> to vector<2x32xf32>
    %240 = arith.addf %238, %239 : vector<2x32xf32>
    %241 = arith.mulf %228, %240 : vector<2x32xf32>
    %242 = arith.addf %237, %241 : vector<2x32xf32>
    %243 = math.tanh %242 : vector<2x32xf32>
    %cst_41 = arith.constant 1.000000e+00 : f32
    %244 = vector.broadcast %cst_41 : f32 to vector<2x32xf32>
    %245 = arith.subf %244, %236 : vector<2x32xf32>
    %246 = arith.mulf %245, %243 : vector<2x32xf32>
    %247 = arith.mulf %236, %218 : vector<2x32xf32>
    %248 = arith.addf %246, %247 : vector<2x32xf32>
    %c0_42 = arith.constant 0 : index
    %c0_43 = arith.constant 0 : index
    %249 = vector.load %arg5[%c0_42, %c0_43] : memref<32x64xf32, #tpu.memory_space<vmem>>, vector<32x64xf32>
    %cst_44 = arith.constant dense<0.000000e+00> : vector<2x64xf32>
    %250 = tpu.matmul %248, %249, %cst_44 {dimension_numbers = #tpu.dot_dimension_numbers<[1], [0], [0], [1], [0, 0, 1, 1], [], []>} : vector<2x32xf32>, vector<32x64xf32>, vector<2x64xf32> -> vector<2x64xf32>
    %c0_45 = arith.constant 0 : index
    %c0_46 = arith.constant 0 : index
    %251 = vector.load %arg6[%c0_45, %c0_46] : memref<1x64xf32, #tpu.memory_space<vmem>>, vector<1x64xf32>
    %252 = vector.broadcast %251 : vector<1x64xf32> to vector<2x64xf32>
    %253 = arith.addf %250, %252 : vector<2x64xf32>
    %cst_47 = arith.constant 0.000000e+00 : f32
    %254 = vector.broadcast %cst_47 : f32 to vector<2x64xf32>
    %255 = arith.maximumf %253, %254 : vector<2x64xf32>
    %c0_48 = arith.constant 0 : index
    %c0_49 = arith.constant 0 : index
    %256 = vector.load %arg7[%c0_48, %c0_49] : memref<64x32xf32, #tpu.memory_space<vmem>>, vector<64x32xf32>
    %cst_50 = arith.constant dense<0.000000e+00> : vector<2x32xf32>
    %257 = tpu.matmul %255, %256, %cst_50 {dimension_numbers = #tpu.dot_dimension_numbers<[1], [0], [0], [1], [0, 0, 1, 1], [], []>} : vector<2x64xf32>, vector<64x32xf32>, vector<2x32xf32> -> vector<2x32xf32>
    %c0_51 = arith.constant 0 : index
    %c0_52 = arith.constant 0 : index
    %258 = vector.load %arg8[%c0_51, %c0_52] : memref<1x32xf32, #tpu.memory_space<vmem>>, vector<1x32xf32>
    %259 = vector.broadcast %258 : vector<1x32xf32> to vector<2x32xf32>
    %260 = arith.addf %257, %259 : vector<2x32xf32>
    %cst_53 = arith.constant 0.000000e+00 : f32
    %261 = vector.broadcast %cst_53 : f32 to vector<2x32xf32>
    %262 = arith.maximumf %260, %261 : vector<2x32xf32>
    %c0_54 = arith.constant 0 : index
    %c0_55 = arith.constant 0 : index
    %263 = vector.load %arg9[%c0_54, %c0_55] : memref<32x2xf32, #tpu.memory_space<vmem>>, vector<32x2xf32>
    %cst_56 = arith.constant dense<0.000000e+00> : vector<2x2xf32>
    %264 = tpu.matmul %262, %263, %cst_56 {dimension_numbers = #tpu.dot_dimension_numbers<[1], [0], [0], [1], [0, 0, 1, 1], [], []>} : vector<2x32xf32>, vector<32x2xf32>, vector<2x2xf32> -> vector<2x2xf32>
    %c0_57 = arith.constant 0 : index
    %c0_58 = arith.constant 0 : index
    %265 = vector.load %arg10[%c0_57, %c0_58] : memref<1x2xf32, #tpu.memory_space<vmem>>, vector<1x2xf32>
    %266 = vector.broadcast %265 : vector<1x2xf32> to vector<2x2xf32>
    %267 = arith.addf %264, %266 : vector<2x2xf32>
    %c0_59 = arith.constant 0 : index
    %c0_60 = arith.constant 0 : index
    %268 = vector.load %arg11[%c0_59, %c0_60] : memref<2x2xf32, #tpu.memory_space<vmem>>, vector<2x2xf32>
    tpu.vector_store %arg11[%c0_59, %c0_60], %267 {strides = array<i32>} : memref<2x2xf32, #tpu.memory_space<vmem>>, vector<2x2xf32>,
    return
  }
}

</mosaic_0001>

<llo_original>
// kernel: tpu_custom_call.1
$region0: #{tpu_custom_call.1}
  #allocation0 [shape = 'u32[]', space=smem, size = 0x4, offset = 0x4, fixed_abs, tag = 'smem constant byte address 0x4 - core index']
  #allocation1 [shape = 'u32[144,128]{1,0:T(1,128)}', space=vmem, size = 0x12000, scoped, tag = 'internal scratch']
  %s0 = inlined_call_operand.vmem [shape: f32[16,16], index: 0, kind: input, shape index: {}]
  %s1 = inlined_call_operand.vmem [shape: f32[16,96], index: 1, kind: input, shape index: {}]
  %s2 = inlined_call_operand.vmem [shape: f32[32,96], index: 2, kind: input, shape index: {}]
  %s3 = inlined_call_operand.vmem [shape: f32[1,96], index: 3, kind: input, shape index: {}]
  %s4 = inlined_call_operand.vmem [shape: f32[1,32], index: 4, kind: input, shape index: {}]
  %s5 = inlined_call_operand.vmem [shape: f32[32,64], index: 5, kind: input, shape index: {}]
  %s6 = inlined_call_operand.vmem [shape: f32[1,64], index: 6, kind: input, shape index: {}]
  %s7 = inlined_call_operand.vmem [shape: f32[64,32], index: 7, kind: input, shape index: {}]
  %s8 = inlined_call_operand.vmem [shape: f32[1,32], index: 8, kind: input, shape index: {}]
  %s9 = inlined_call_operand.vmem [shape: f32[32,2], index: 9, kind: input, shape index: {}]
  %s10 = inlined_call_operand.vmem [shape: f32[1,2], index: 10, kind: input, shape index: {}]
  %s11 = inlined_call_operand.hbm [shape: f32[2,2], index: 11, kind: output, shape index: {}]
  %s12 = sld [smem:[#allocation0]]
  $region54: #{tpu_custom_call.1} parent=0
    _
  %s14 = ssub.s32 1, %s12
  %s15 = scalar_select 0, %s14, %s12
  $region1: #{tpu_custom_call.1} parent=0
    #allocation2 [shape = 'u8[1024]{0}', space=vmem, size = 0x400, scoped, tag = 'output window, operand 0, single buffered']
    #allocation3 [shape = 's32[1]{0}', space=sflag, size = 0x4, scoped, tag = 'scoped memory for tpu_custom_call.1']
    %16 = vsyncpa [#allocation3], 0
    // Predicated region
    $region2: #{tpu_custom_call.1} parent=1 // pred_check
      _
    $region3: #{tpu_custom_call.1} parent=1 // pred_check_branch
      %18 = sbr.rel (0) target = $region5
    $region4: #{tpu_custom_call.1} parent=1 // pred_region
      _
    $region5: #{tpu_custom_call.1} parent=1 // pred_fallthru
      _
    // Predicated region
    $region6: #{tpu_custom_call.1} parent=1 // pred_check
      _
    $region7: #{tpu_custom_call.1} parent=1 // pred_check_branch
      %20 = sbr.rel (0) target = $region9
    $region8: #{tpu_custom_call.1} parent=1 // pred_region
      _
    $region9: #{tpu_custom_call.1} parent=1 // pred_fallthru
      _
    // Predicated region
    $region10: #{tpu_custom_call.1} parent=1 // pred_check
      _
    $region11: #{tpu_custom_call.1} parent=1 // pred_check_branch
      %22 = sbr.rel (0) target = $region13
    $region12: #{tpu_custom_call.1} parent=1 // pred_region
      _
    $region13: #{tpu_custom_call.1} parent=1 // pred_fallthru
      _
    // Predicated region
    $region14: #{tpu_custom_call.1} parent=1 // pred_check
      _
    $region15: #{tpu_custom_call.1} parent=1 // pred_check_branch
      %24 = sbr.rel (0) target = $region17
    $region16: #{tpu_custom_call.1} parent=1 // pred_region
      _
    $region17: #{tpu_custom_call.1} parent=1 // pred_fallthru
      _
    // Predicated region
    $region18: #{tpu_custom_call.1} parent=1 // pred_check
      _
    $region19: #{tpu_custom_call.1} parent=1 // pred_check_branch
      %26 = sbr.rel (0) target = $region21
    $region20: #{tpu_custom_call.1} parent=1 // pred_region
      _
    $region21: #{tpu_custom_call.1} parent=1 // pred_fallthru
      _
    // Predicated region
    $region22: #{tpu_custom_call.1} parent=1 // pred_check
      _
    $region23: #{tpu_custom_call.1} parent=1 // pred_check_branch
      %28 = sbr.rel (0) target = $region25
    $region24: #{tpu_custom_call.1} parent=1 // pred_region
      _
    $region25: #{tpu_custom_call.1} parent=1 // pred_fallthru
      _
    // Predicated region
    $region26: #{tpu_custom_call.1} parent=1 // pred_check
      _
    $region27: #{tpu_custom_call.1} parent=1 // pred_check_branch
      %30 = sbr.rel (0) target = $region29
    $region28: #{tpu_custom_call.1} parent=1 // pred_region
      _
    $region29: #{tpu_custom_call.1} parent=1 // pred_fallthru
      _
    // Predicated region
    $region30: #{tpu_custom_call.1} parent=1 // pred_check
      _
    $region31: #{tpu_custom_call.1} parent=1 // pred_check_branch
      %32 = sbr.rel (0) target = $region33
    $region32: #{tpu_custom_call.1} parent=1 // pred_region
      _
    $region33: #{tpu_custom_call.1} parent=1 // pred_fallthru
      _
    // Predicated region
    $region34: #{tpu_custom_call.1} parent=1 // pred_check
      _
    $region35: #{tpu_custom_call.1} parent=1 // pred_check_branch
      %34 = sbr.rel (0) target = $region37
    $region36: #{tpu_custom_call.1} parent=1 // pred_region
      _
    $region37: #{tpu_custom_call.1} parent=1 // pred_fallthru
      _
    // Predicated region
    $region38: #{tpu_custom_call.1} parent=1 // pred_check
      _
    $region39: #{tpu_custom_call.1} parent=1 // pred_check_branch
      %36 = sbr.rel (0) target = $region41
    $region40: #{tpu_custom_call.1} parent=1 // pred_region
      _
    $region41: #{tpu_custom_call.1} parent=1 // pred_fallthru
      _
    // Predicated region
    $region42: #{tpu_custom_call.1} parent=1 // pred_check
      _
    $region43: #{tpu_custom_call.1} parent=1 // pred_check_branch
      %38 = sbr.rel (0) target = $region45
    $region44: #{tpu_custom_call.1} parent=1 // pred_region
      _
    $region45: #{tpu_custom_call.1} parent=1 // pred_fallthru
      _
    %v39 = vld [vmem:[%s0] sm:$0xff]
    %v40 = vld [vmem:[%s0 + $0x8] sm:$0xff]
    %v41 = vld [vmem:[%s1] sm:$0xff]
    %v42 = vld [vmem:[%s1 + $0x8] sm:$0xff]
    %v43 = vld [vmem:[%s3] sm:$0x1]
    %v45 = vlaneseq
    %v46 = vshrl.u32 %v45, 7
    %v47 = vsub.s32 0, %v46
    %v48 = vrot.slane %v43, %v47
    %vm50 = vcmask 130048
    %v52 = vsel %vm50, %v39, 0
    %v55 = vsel %vm50, %v40, 0
    %57 = vmatprep.subr.mxu0 0.0
    %58 = vmatpush1.msra.mxu0 0.0
    %59 = vmatprep.subr.mxu0 0.0
    %60 = vmatpush1.msra.mxu0 0.0
    %61 = vmatprep.subr.mxu0 0.0
    %62 = vmatpush1.msra.mxu0 0.0
    %63 = vmatprep.subr.mxu0 0.0
    %64 = vmatpush1.msra.mxu0 0.0
    %65 = vmatprep.subr.mxu0 0.0
    %66 = vmatpush1.msra.mxu0 0.0
    %67 = vmatprep.subr.mxu0 0.0
    %68 = vmatpush1.msra.mxu0 0.0
    %69 = vmatprep.subr.mxu0 0.0
    %70 = vmatpush1.msra.mxu0 0.0
    %71 = vmatprep.subr.mxu0 0.0
    %72 = vmatpush1.msra.mxu0 0.0
    %73 = vmatprep.subr.mxu0 0.0
    %74 = vmatpush1.msra.mxu0 0.0
    %75 = vmatprep.subr.mxu0 0.0
    %76 = vmatpush1.msra.mxu0 0.0
    %77 = vmatprep.subr.mxu0 0.0
    %78 = vmatpush1.msra.mxu0 0.0
    %79 = vmatprep.subr.mxu0 0.0
    %80 = vmatpush1.msra.mxu0 0.0
    %81 = vmatprep.subr.mxu0 0.0
    %82 = vmatpush1.msra.mxu0 0.0
    %83 = vmatprep.subr.mxu0 0.0
    %84 = vmatpush1.msra.mxu0 0.0
    %85 = vmatprep.subr.mxu0 0.0
    %86 = vmatpush1.msra.mxu0 %v42
    %87 = vmatprep.subr.mxu0 0.0
    %88 = vmatpush1.msra.mxu0 %v41
    %89 = vmatprep.subr.mxu0 0.0
    %90 = vmatpush2.msra.mxu0 0.0
    %91 = vmatprep.subr.mxu0 0.0
    %92 = vmatpush2.msra.mxu0 0.0
    %93 = vmatprep.subr.mxu0 0.0
    %94 = vmatpush2.msra.mxu0 0.0
    %95 = vmatprep.subr.mxu0 0.0
    %96 = vmatpush2.msra.mxu0 0.0
    %97 = vmatprep.subr.mxu0 0.0
    %98 = vmatpush2.msra.mxu0 0.0
    %99 = vmatprep.subr.mxu0 0.0
    %100 = vmatpush2.msra.mxu0 0.0
    %101 = vmatprep.subr.mxu0 0.0
    %102 = vmatpush2.msra.mxu0 0.0
    %103 = vmatprep.subr.mxu0 0.0
    %104 = vmatpush2.msra.mxu0 0.0
    %105 = vmatprep.subr.mxu0 0.0
    %106 = vmatpush2.msra.mxu0 0.0
    %107 = vmatprep.subr.mxu0 0.0
    %108 = vmatpush2.msra.mxu0 0.0
    %109 = vmatprep.subr.mxu0 0.0
    %110 = vmatpush2.msra.mxu0 0.0
    %111 = vmatprep.subr.mxu0 0.0
    %112 = vmatpush2.msra.mxu0 0.0
    %113 = vmatprep.subr.mxu0 0.0
    %114 = vmatpush2.msra.mxu0 0.0
    %115 = vmatprep.subr.mxu0 0.0
    %116 = vmatpush2.msra.mxu0 0.0
    %117 = vmatprep.subr.mxu0 0.0
    %118 = vmatpush2.msra.mxu0 0.0
    %119 = vmatprep.subr.mxu0 0.0
    %120 = vmatpush2.msra.mxu0 0.0
    %121 = vmatprep.mubr.f32.mxu0 0.0
    %122 = vmatmul.mubr.f32.gmra.mxu0 %v52
    %v123 = vpop.f32.mrf.mxu0
    %v124 = vadd.f32 %v48, %v123
    %v125 = vpop.f32.mrf.mxu0
    %126 = vmatprep.mubr.f32.mxu0 0.0
    %127 = vmatmul.mubr.f32.gmra.mxu0 %v55
    %v128 = vpop.f32.mrf.mxu0
    %v129 = vadd.f32 %v48, %v128
    %v130 = vpop.f32.mrf.mxu0
    %131 = vdwg.mxu0
    %v132 = vld [vmem:[%s2] sm:$0xff]
    %v133 = vld [vmem:[%s2 + $0x8] sm:$0xff]
    %v134 = vld [vmem:[%s2 + $0x10] sm:$0xff]
    %v135 = vld [vmem:[%s2 + $0x18] sm:$0xff]
    %v136 = vld [vmem:[%s4] sm:$0x1]
    %vm137 = vcmask 261120
    %v139 = vsel %vm137, 0.0, 0
    %141 = vmatprep.subr.mxu0 0.0
    %142 = vmatpush1.msra.mxu0 0.0
    %143 = vmatprep.subr.mxu0 0.0
    %144 = vmatpush1.msra.mxu0 0.0
    %145 = vmatprep.subr.mxu0 0.0
    %146 = vmatpush1.msra.mxu0 0.0
    %147 = vmatprep.subr.mxu0 0.0
    %148 = vmatpush1.msra.mxu0 0.0
    %149 = vmatprep.subr.mxu0 0.0
    %150 = vmatpush1.msra.mxu0 0.0
    %151 = vmatprep.subr.mxu0 0.0
    %152 = vmatpush1.msra.mxu0 0.0
    %153 = vmatprep.subr.mxu0 0.0
    %154 = vmatpush1.msra.mxu0 0.0
    %155 = vmatprep.subr.mxu0 0.0
    %156 = vmatpush1.msra.mxu0 0.0
    %157 = vmatprep.subr.mxu0 0.0
    %158 = vmatpush1.msra.mxu0 0.0
    %159 = vmatprep.subr.mxu0 0.0
    %160 = vmatpush1.msra.mxu0 0.0
    %161 = vmatprep.subr.mxu0 0.0
    %162 = vmatpush1.msra.mxu0 0.0
    %163 = vmatprep.subr.mxu0 0.0
    %164 = vmatpush1.msra.mxu0 0.0
    %165 = vmatprep.subr.mxu0 0.0
    %166 = vmatpush1.msra.mxu0 %v135
    %167 = vmatprep.subr.mxu0 0.0
    %168 = vmatpush1.msra.mxu0 %v134
    %169 = vmatprep.subr.mxu0 0.0
    %170 = vmatpush1.msra.mxu0 %v133
    %171 = vmatprep.subr.mxu0 0.0
    %172 = vmatpush1.msra.mxu0 %v132
    %173 = vmatprep.subr.mxu0 0.0
    %174 = vmatpush2.msra.mxu0 0.0
    %175 = vmatprep.subr.mxu0 0.0
    %176 = vmatpush2.msra.mxu0 0.0
    %177 = vmatprep.subr.mxu0 0.0
    %178 = vmatpush2.msra.mxu0 0.0
    %179 = vmatprep.subr.mxu0 0.0
    %180 = vmatpush2.msra.mxu0 0.0
    %181 = vmatprep.subr.mxu0 0.0
    %182 = vmatpush2.msra.mxu0 0.0
    %183 = vmatprep.subr.mxu0 0.0
    %184 = vmatpush2.msra.mxu0 0.0
    %185 = vmatprep.subr.mxu0 0.0
    %186 = vmatpush2.msra.mxu0 0.0
    %187 = vmatprep.subr.mxu0 0.0
    %188 = vmatpush2.msra.mxu0 0.0
    %189 = vmatprep.subr.mxu0 0.0
    %190 = vmatpush2.msra.mxu0 0.0
    %191 = vmatprep.subr.mxu0 0.0
    %192 = vmatpush2.msra.mxu0 0.0
    %193 = vmatprep.subr.mxu0 0.0
    %194 = vmatpush2.msra.mxu0 0.0
    %195 = vmatprep.subr.mxu0 0.0
    %196 = vmatpush2.msra.mxu0 0.0
    %197 = vmatprep.subr.mxu0 0.0
    %198 = vmatpush2.msra.mxu0 0.0
    %199 = vmatprep.subr.mxu0 0.0
    %200 = vmatpush2.msra.mxu0 0.0
    %201 = vmatprep.subr.mxu0 0.0
    %202 = vmatpush2.msra.mxu0 0.0
    %203 = vmatprep.subr.mxu0 0.0
    %204 = vmatpush2.msra.mxu0 0.0
    %205 = vmatprep.mubr.f32.mxu0 0.0
    %206 = vmatmul.mubr.f32.gmra.mxu0 %v139
    %v207 = vpop.f32.mrf.mxu0
    %v208 = vadd.f32 0.0, %v207
    %v209 = vpop.f32.mrf.mxu0
    %210 = vdwg.mxu0
    %v211 = vadd.f32 %v124, %v208
    %v212 = vxor.u32 %v211, 2147483648
    %v213 = vmul.f32 %v212, 1.442695
    %v214 = vpow.pop %v213
    %v215 = vadd.f32 %v214, 1.0
    %v216 = vrcp.pop %v215
    %v217 = vmul.f32 1.0, %v216
    %v219 = vlaneseq
    %v220 = vshrl.u32 %v219, 7
    %v221 = vsub.s32 0, %v220
    %v222 = vrot.slane %v136, %v221
    %223 = vrot.lane.b32.xlu0 %v222, 64
    %v224 = vpop.permute.xlu0 %223
    %v226 = vadd.f32 %v208, %v224
    %228 = vrot.lane.b32.xlu0 %v226, 64
    %v229 = vpop.permute.xlu0 %228
    %v231 = vmul.f32 %v217, %v229
    %233 = vrot.lane.b32.xlu0 %v231, 64
    %v234 = vpop.permute.xlu0 %233
    %v236 = vadd.f32 %v124, %v234
    %v237 = vtanh.pop %v236
    %v238 = vsub.f32 1.0, %v217
    %240 = vrot.lane.b32.xlu0 %v237, 96
    %v241 = vpop.permute.xlu0 %240
    %v243 = vmul.f32 %v238, %v241
    %v244 = vmul.f32 %v217, 0.0
    %v245 = vadd.f32 %v243, %v244
    %247 = vrot.lane.b32.xlu0 %v245, 96
    %v248 = vpop.permute.xlu0 %247
    %v249 = vsel %vm137, %v248, 0
    %251 = vmatprep.subr.mxu0 0.0
    %252 = vmatpush1.msra.mxu0 0.0
    %253 = vmatprep.subr.mxu0 0.0
    %254 = vmatpush1.msra.mxu0 0.0
    %255 = vmatprep.subr.mxu0 0.0
    %256 = vmatpush1.msra.mxu0 0.0
    %257 = vmatprep.subr.mxu0 0.0
    %258 = vmatpush1.msra.mxu0 0.0
    %259 = vmatprep.subr.mxu0 0.0
    %260 = vmatpush1.msra.mxu0 0.0
    %261 = vmatprep.subr.mxu0 0.0
    %262 = vmatpush1.msra.mxu0 0.0
    %263 = vmatprep.subr.mxu0 0.0
    %264 = vmatpush1.msra.mxu0 0.0
    %265 = vmatprep.subr.mxu0 0.0
    %266 = vmatpush1.msra.mxu0 0.0
    %267 = vmatprep.subr.mxu0 0.0
    %268 = vmatpush1.msra.mxu0 0.0
    %269 = vmatprep.subr.mxu0 0.0
    %270 = vmatpush1.msra.mxu0 0.0
    %271 = vmatprep.subr.mxu0 0.0
    %272 = vmatpush1.msra.mxu0 0.0
    %273 = vmatprep.subr.mxu0 0.0
    %274 = vmatpush1.msra.mxu0 0.0
    %275 = vmatprep.subr.mxu0 0.0
    %276 = vmatpush1.msra.mxu0 %v135
    %277 = vmatprep.subr.mxu0 0.0
    %278 = vmatpush1.msra.mxu0 %v134
    %279 = vmatprep.subr.mxu0 0.0
    %280 = vmatpush1.msra.mxu0 %v133
    %281 = vmatprep.subr.mxu0 0.0
    %282 = vmatpush1.msra.mxu0 %v132
    %283 = vmatprep.subr.mxu0 0.0
    %284 = vmatpush2.msra.mxu0 0.0
    %285 = vmatprep.subr.mxu0 0.0
    %286 = vmatpush2.msra.mxu0 0.0
    %287 = vmatprep.subr.mxu0 0.0
    %288 = vmatpush2.msra.mxu0 0.0
    %289 = vmatprep.subr.mxu0 0.0
    %290 = vmatpush2.msra.mxu0 0.0
    %291 = vmatprep.subr.mxu0 0.0
    %292 = vmatpush2.msra.mxu0 0.0
    %293 = vmatprep.subr.mxu0 0.0
    %294 = vmatpush2.msra.mxu0 0.0
    %295 = vmatprep.subr.mxu0 0.0
    %296 = vmatpush2.msra.mxu0 0.0
    %297 = vmatprep.subr.mxu0 0.0
    %298 = vmatpush2.msra.mxu0 0.0
    %299 = vmatprep.subr.mxu0 0.0
    %300 = vmatpush2.msra.mxu0 0.0
    %301 = vmatprep.subr.mxu0 0.0
    %302 = vmatpush2.msra.mxu0 0.0
    %303 = vmatprep.subr.mxu0 0.0
    %304 = vmatpush2.msra.mxu0 0.0
    %305 = vmatprep.subr.mxu0 0.0
    %306 = vmatpush2.msra.mxu0 0.0
    %307 = vmatprep.subr.mxu0 0.0
    %308 = vmatpush2.msra.mxu0 0.0
    %309 = vmatprep.subr.mxu0 0.0
    %310 = vmatpush2.msra.mxu0 0.0
    %311 = vmatprep.subr.mxu0 0.0
    %312 = vmatpush2.msra.mxu0 0.0
    %313 = vmatprep.subr.mxu0 0.0
    %314 = vmatpush2.msra.mxu0 0.0
    %315 = vmatprep.mubr.f32.mxu0 0.0
    %316 = vmatmul.mubr.f32.gmra.mxu0 %v249
    %v317 = vpop.f32.mrf.mxu0
    %v318 = vadd.f32 0.0, %v317
    %v319 = vpop.f32.mrf.mxu0
    %320 = vdwg.mxu0
    %v322 = vrot.slane %v318, 6
    %v324 = vadd.f32 %v124, %v322
    %v325 = vxor.u32 %v324, 2147483648
    %v326 = vmul.f32 %v325, 1.442695
    %v327 = vpow.pop %v326
    %v328 = vadd.f32 %v327, 1.0
    %v329 = vrcp.pop %v328
    %v330 = vmul.f32 1.0, %v329
    %v331 = vadd.f32 %v318, %v224
    %v333 = vrot.slane %v331, 6
    %334 = vrot.lane.b32.xlu0 %v333, 64
    %v335 = vpop.permute.xlu0 %334
    %v337 = vmul.f32 %v330, %v335
    %339 = vrot.lane.b32.xlu0 %v337, 64
    %v340 = vpop.permute.xlu0 %339
    %v342 = vadd.f32 %v124, %v340
    %v343 = vtanh.pop %v342
    %v344 = vsub.f32 1.0, %v330
    %346 = vrot.lane.b32.xlu0 %v343, 96
    %v347 = vpop.permute.xlu0 %346
    %v349 = vmul.f32 %v344, %v347
    %v350 = vrot.slane %v245, 6
    %v352 = vmul.f32 %v330, %v350
    %v353 = vadd.f32 %v349, %v352
    %v355 = vrot.slane %v353, 2
    %356 = vrot.lane.b32.xlu0 %v355, 96
    %v357 = vpop.permute.xlu0 %356
    %v358 = vsel %vm137, %v357, 0
    %360 = vmatprep.subr.mxu0 0.0
    %361 = vmatpush1.msra.mxu0 0.0
    %362 = vmatprep.subr.mxu0 0.0
    %363 = vmatpush1.msra.mxu0 0.0
    %364 = vmatprep.subr.mxu0 0.0
    %365 = vmatpush1.msra.mxu0 0.0
    %366 = vmatprep.subr.mxu0 0.0
    %367 = vmatpush1.msra.mxu0 0.0
    %368 = vmatprep.subr.mxu0 0.0
    %369 = vmatpush1.msra.mxu0 0.0
    %370 = vmatprep.subr.mxu0 0.0
    %371 = vmatpush1.msra.mxu0 0.0
    %372 = vmatprep.subr.mxu0 0.0
    %373 = vmatpush1.msra.mxu0 0.0
    %374 = vmatprep.subr.mxu0 0.0
    %375 = vmatpush1.msra.mxu0 0.0
    %376 = vmatprep.subr.mxu0 0.0
    %377 = vmatpush1.msra.mxu0 0.0
    %378 = vmatprep.subr.mxu0 0.0
    %379 = vmatpush1.msra.mxu0 0.0
    %380 = vmatprep.subr.mxu0 0.0
    %381 = vmatpush1.msra.mxu0 0.0
    %382 = vmatprep.subr.mxu0 0.0
    %383 = vmatpush1.msra.mxu0 0.0
    %384 = vmatprep.subr.mxu0 0.0
    %385 = vmatpush1.msra.mxu0 %v135
    %386 = vmatprep.subr.mxu0 0.0
    %387 = vmatpush1.msra.mxu0 %v134
    %388 = vmatprep.subr.mxu0 0.0
    %389 = vmatpush1.msra.mxu0 %v133
    %390 = vmatprep.subr.mxu0 0.0
    %391 = vmatpush1.msra.mxu0 %v132
    %392 = vmatprep.subr.mxu0 0.0
    %393 = vmatpush2.msra.mxu0 0.0
    %394 = vmatprep.subr.mxu0 0.0
    %395 = vmatpush2.msra.mxu0 0.0
    %396 = vmatprep.subr.mxu0 0.0
    %397 = vmatpush2.msra.mxu0 0.0
    %398 = vmatprep.subr.mxu0 0.0
    %399 = vmatpush2.msra.mxu0 0.0
    %400 = vmatprep.subr.mxu0 0.0
    %401 = vmatpush2.msra.mxu0 0.0
    %402 = vmatprep.subr.mxu0 0.0
    %403 = vmatpush2.msra.mxu0 0.0
    %404 = vmatprep.subr.mxu0 0.0
    %405 = vmatpush2.msra.mxu0 0.0
    %406 = vmatprep.subr.mxu0 0.0
    %407 = vmatpush2.msra.mxu0 0.0
    %408 = vmatprep.subr.mxu0 0.0
    %409 = vmatpush2.msra.mxu0 0.0
    %410 = vmatprep.subr.mxu0 0.0
    %411 = vmatpush2.msra.mxu0 0.0
    %412 = vmatprep.subr.mxu0 0.0
    %413 = vmatpush2.msra.mxu0 0.0
    %414 = vmatprep.subr.mxu0 0.0
    %415 = vmatpush2.msra.mxu0 0.0
    %416 = vmatprep.subr.mxu0 0.0
    %417 = vmatpush2.msra.mxu0 0.0
    %418 = vmatprep.subr.mxu0 0.0
    %419 = vmatpush2.msra.mxu0 0.0
    %420 = vmatprep.subr.mxu0 0.0
    %421 = vmatpush2.msra.mxu0 0.0
    %422 = vmatprep.subr.mxu0 0.0
    %423 = vmatpush2.msra.mxu0 0.0
    %424 = vmatprep.mubr.f32.mxu0 0.0
    %425 = vmatmul.mubr.f32.gmra.mxu0 %v358
    %v426 = vpop.f32.mrf.mxu0
    %v427 = vadd.f32 0.0, %v426
    %v428 = vpop.f32.mrf.mxu0
    %429 = vdwg.mxu0
    %v431 = vrot.slane %v427, 4
    %v433 = vadd.f32 %v124, %v431
    %v434 = vxor.u32 %v433, 2147483648
    %v435 = vmul.f32 %v434, 1.442695
    %v436 = vpow.pop %v435
    %v437 = vadd.f32 %v436, 1.0
    %v438 = vrcp.pop %v437
    %v439 = vmul.f32 1.0, %v438
    %v440 = vadd.f32 %v427, %v224
    %v442 = vrot.slane %v440, 4
    %443 = vrot.lane.b32.xlu0 %v442, 64
    %v444 = vpop.permute.xlu0 %443
    %v446 = vmul.f32 %v439, %v444
    %448 = vrot.lane.b32.xlu0 %v446, 64
    %v449 = vpop.permute.xlu0 %448
    %v451 = vadd.f32 %v124, %v449
    %v452 = vtanh.pop %v451
    %v453 = vsub.f32 1.0, %v439
    %455 = vrot.lane.b32.xlu0 %v452, 96
    %v456 = vpop.permute.xlu0 %455
    %v458 = vmul.f32 %v453, %v456
    %v459 = vrot.slane %v353, 6
    %v461 = vmul.f32 %v439, %v459
    %v462 = vadd.f32 %v458, %v461
    %v464 = vrot.slane %v462, 4
    %465 = vrot.lane.b32.xlu0 %v464, 96
    %v466 = vpop.permute.xlu0 %465
    %v467 = vsel %vm137, %v466, 0
    %469 = vmatprep.subr.mxu0 0.0
    %470 = vmatpush1.msra.mxu0 0.0
    %471 = vmatprep.subr.mxu0 0.0
    %472 = vmatpush1.msra.mxu0 0.0
    %473 = vmatprep.subr.mxu0 0.0
    %474 = vmatpush1.msra.mxu0 0.0
    %475 = vmatprep.subr.mxu0 0.0
    %476 = vmatpush1.msra.mxu0 0.0
    %477 = vmatprep.subr.mxu0 0.0
    %478 = vmatpush1.msra.mxu0 0.0
    %479 = vmatprep.subr.mxu0 0.0
    %480 = vmatpush1.msra.mxu0 0.0
    %481 = vmatprep.subr.mxu0 0.0
    %482 = vmatpush1.msra.mxu0 0.0
    %483 = vmatprep.subr.mxu0 0.0
    %484 = vmatpush1.msra.mxu0 0.0
    %485 = vmatprep.subr.mxu0 0.0
    %486 = vmatpush1.msra.mxu0 0.0
    %487 = vmatprep.subr.mxu0 0.0
    %488 = vmatpush1.msra.mxu0 0.0
    %489 = vmatprep.subr.mxu0 0.0
    %490 = vmatpush1.msra.mxu0 0.0
    %491 = vmatprep.subr.mxu0 0.0
    %492 = vmatpush1.msra.mxu0 0.0
    %493 = vmatprep.subr.mxu0 0.0
    %494 = vmatpush1.msra.mxu0 %v135
    %495 = vmatprep.subr.mxu0 0.0
    %496 = vmatpush1.msra.mxu0 %v134
    %497 = vmatprep.subr.mxu0 0.0
    %498 = vmatpush1.msra.mxu0 %v133
    %499 = vmatprep.subr.mxu0 0.0
    %500 = vmatpush1.msra.mxu0 %v132
    %501 = vmatprep.subr.mxu0 0.0
    %502 = vmatpush2.msra.mxu0 0.0
    %503 = vmatprep.subr.mxu0 0.0
    %504 = vmatpush2.msra.mxu0 0.0
    %505 = vmatprep.subr.mxu0 0.0
    %506 = vmatpush2.msra.mxu0 0.0
    %507 = vmatprep.subr.mxu0 0.0
    %508 = vmatpush2.msra.mxu0 0.0
    %509 = vmatprep.subr.mxu0 0.0
    %510 = vmatpush2.msra.mxu0 0.0
    %511 = vmatprep.subr.mxu0 0.0
    %512 = vmatpush2.msra.mxu0 0.0
    %513 = vmatprep.subr.mxu0 0.0
    %514 = vmatpush2.msra.mxu0 0.0
    %515 = vmatprep.subr.mxu0 0.0
    %516 = vmatpush2.msra.mxu0 0.0
    %517 = vmatprep.subr.mxu0 0.0
    %518 = vmatpush2.msra.mxu0 0.0
    %519 = vmatprep.subr.mxu0 0.0
    %520 = vmatpush2.msra.mxu0 0.0
    %521 = vmatprep.subr.mxu0 0.0
    %522 = vmatpush2.msra.mxu0 0.0
    %523 = vmatprep.subr.mxu0 0.0
    %524 = vmatpush2.msra.mxu0 0.0
    %525 = vmatprep.subr.mxu0 0.0
    %526 = vmatpush2.msra.mxu0 0.0
    %527 = vmatprep.subr.mxu0 0.0
    %528 = vmatpush2.msra.mxu0 0.0
    %529 = vmatprep.subr.mxu0 0.0
    %530 = vmatpush2.msra.mxu0 0.0
    %531 = vmatprep.subr.mxu0 0.0
    %532 = vmatpush2.msra.mxu0 0.0
    %533 = vmatprep.mubr.f32.mxu0 0.0
    %534 = vmatmul.mubr.f32.gmra.mxu0 %v467
    %v535 = vpop.f32.mrf.mxu0
    %v536 = vadd.f32 0.0, %v535
    %v537 = vpop.f32.mrf.mxu0
    %538 = vdwg.mxu0
    %v540 = vrot.slane %v536, 2
    %v542 = vadd.f32 %v124, %v540
    %v543 = vxor.u32 %v542, 2147483648
    %v544 = vmul.f32 %v543, 1.442695
    %v545 = vpow.pop %v544
    %v546 = vadd.f32 %v545, 1.0
    %v547 = vrcp.pop %v546
    %v548 = vmul.f32 1.0, %v547
    %v549 = vadd.f32 %v536, %v224
    %v551 = vrot.slane %v549, 2
    %552 = vrot.lane.b32.xlu0 %v551, 64
    %v553 = vpop.permute.xlu0 %552
    %v555 = vmul.f32 %v548, %v553
    %557 = vrot.lane.b32.xlu0 %v555, 64
    %v558 = vpop.permute.xlu0 %557
    %v560 = vadd.f32 %v124, %v558
    %v561 = vtanh.pop %v560
    %v562 = vsub.f32 1.0, %v548
    %564 = vrot.lane.b32.xlu0 %v561, 96
    %v565 = vpop.permute.xlu0 %564
    %v567 = vmul.f32 %v562, %v565
    %v568 = vrot.slane %v462, 6
    %v570 = vmul.f32 %v548, %v568
    %v571 = vadd.f32 %v567, %v570
    %v573 = vrot.slane %v571, 6
    %574 = vrot.lane.b32.xlu0 %v573, 96
    %v575 = vpop.permute.xlu0 %574
    %v576 = vsel %vm137, %v575, 0
    %578 = vmatprep.subr.mxu0 0.0
    %579 = vmatpush1.msra.mxu0 0.0
    %580 = vmatprep.subr.mxu0 0.0
    %581 = vmatpush1.msra.mxu0 0.0
    %582 = vmatprep.subr.mxu0 0.0
    %583 = vmatpush1.msra.mxu0 0.0
    %584 = vmatprep.subr.mxu0 0.0
    %585 = vmatpush1.msra.mxu0 0.0
    %586 = vmatprep.subr.mxu0 0.0
    %587 = vmatpush1.msra.mxu0 0.0
    %588 = vmatprep.subr.mxu0 0.0
    %589 = vmatpush1.msra.mxu0 0.0
    %590 = vmatprep.subr.mxu0 0.0
    %591 = vmatpush1.msra.mxu0 0.0
    %592 = vmatprep.subr.mxu0 0.0
    %593 = vmatpush1.msra.mxu0 0.0
    %594 = vmatprep.subr.mxu0 0.0
    %595 = vmatpush1.msra.mxu0 0.0
    %596 = vmatprep.subr.mxu0 0.0
    %597 = vmatpush1.msra.mxu0 0.0
    %598 = vmatprep.subr.mxu0 0.0
    %599 = vmatpush1.msra.mxu0 0.0
    %600 = vmatprep.subr.mxu0 0.0
    %601 = vmatpush1.msra.mxu0 0.0
    %602 = vmatprep.subr.mxu0 0.0
    %603 = vmatpush1.msra.mxu0 %v135
    %604 = vmatprep.subr.mxu0 0.0
    %605 = vmatpush1.msra.mxu0 %v134
    %606 = vmatprep.subr.mxu0 0.0
    %607 = vmatpush1.msra.mxu0 %v133
    %608 = vmatprep.subr.mxu0 0.0
    %609 = vmatpush1.msra.mxu0 %v132
    %610 = vmatprep.subr.mxu0 0.0
    %611 = vmatpush2.msra.mxu0 0.0
    %612 = vmatprep.subr.mxu0 0.0
    %613 = vmatpush2.msra.mxu0 0.0
    %614 = vmatprep.subr.mxu0 0.0
    %615 = vmatpush2.msra.mxu0 0.0
    %616 = vmatprep.subr.mxu0 0.0
    %617 = vmatpush2.msra.mxu0 0.0
    %618 = vmatprep.subr.mxu0 0.0
    %619 = vmatpush2.msra.mxu0 0.0
    %620 = vmatprep.subr.mxu0 0.0
    %621 = vmatpush2.msra.mxu0 0.0
    %622 = vmatprep.subr.mxu0 0.0
    %623 = vmatpush2.msra.mxu0 0.0
    %624 = vmatprep.subr.mxu0 0.0
    %625 = vmatpush2.msra.mxu0 0.0
    %626 = vmatprep.subr.mxu0 0.0
    %627 = vmatpush2.msra.mxu0 0.0
    %628 = vmatprep.subr.mxu0 0.0
    %629 = vmatpush2.msra.mxu0 0.0
    %630 = vmatprep.subr.mxu0 0.0
    %631 = vmatpush2.msra.mxu0 0.0
    %632 = vmatprep.subr.mxu0 0.0
    %633 = vmatpush2.msra.mxu0 0.0
    %634 = vmatprep.subr.mxu0 0.0
    %635 = vmatpush2.msra.mxu0 0.0
    %636 = vmatprep.subr.mxu0 0.0
    %637 = vmatpush2.msra.mxu0 0.0
    %638 = vmatprep.subr.mxu0 0.0
    %639 = vmatpush2.msra.mxu0 0.0
    %640 = vmatprep.subr.mxu0 0.0
    %641 = vmatpush2.msra.mxu0 0.0
    %642 = vmatprep.mubr.f32.mxu0 0.0
    %643 = vmatmul.mubr.f32.gmra.mxu0 %v576
    %v644 = vpop.f32.mrf.mxu0
    %v645 = vadd.f32 0.0, %v644
    %v646 = vpop.f32.mrf.mxu0
    %647 = vdwg.mxu0
    %v648 = vadd.f32 %v129, %v645
    %v649 = vxor.u32 %v648, 2147483648
    %v650 = vmul.f32 %v649, 1.442695
    %v651 = vpow.pop %v650
    %v652 = vadd.f32 %v651, 1.0
    %v653 = vrcp.pop %v652
    %v654 = vmul.f32 1.0, %v653
    %v655 = vadd.f32 %v645, %v224
    %657 = vrot.lane.b32.xlu0 %v655, 64
    %v658 = vpop.permute.xlu0 %657
    %v660 = vmul.f32 %v654, %v658
    %662 = vrot.lane.b32.xlu0 %v660, 64
    %v663 = vpop.permute.xlu0 %662
    %v665 = vadd.f32 %v129, %v663
    %v666 = vtanh.pop %v665
    %v667 = vsub.f32 1.0, %v654
    %669 = vrot.lane.b32.xlu0 %v666, 96
    %v670 = vpop.permute.xlu0 %669
    %v672 = vmul.f32 %v667, %v670
    %v674 = vmul.f32 %v654, %v573
    %v675 = vadd.f32 %v672, %v674
    %677 = vrot.lane.b32.xlu0 %v675, 96
    %v678 = vpop.permute.xlu0 %677
    %v679 = vsel %vm137, %v678, 0
    %681 = vmatprep.subr.mxu0 0.0
    %682 = vmatpush1.msra.mxu0 0.0
    %683 = vmatprep.subr.mxu0 0.0
    %684 = vmatpush1.msra.mxu0 0.0
    %685 = vmatprep.subr.mxu0 0.0
    %686 = vmatpush1.msra.mxu0 0.0
    %687 = vmatprep.subr.mxu0 0.0
    %688 = vmatpush1.msra.mxu0 0.0
    %689 = vmatprep.subr.mxu0 0.0
    %690 = vmatpush1.msra.mxu0 0.0
    %691 = vmatprep.subr.mxu0 0.0
    %692 = vmatpush1.msra.mxu0 0.0
    %693 = vmatprep.subr.mxu0 0.0
    %694 = vmatpush1.msra.mxu0 0.0
    %695 = vmatprep.subr.mxu0 0.0
    %696 = vmatpush1.msra.mxu0 0.0
    %697 = vmatprep.subr.mxu0 0.0
    %698 = vmatpush1.msra.mxu0 0.0
    %699 = vmatprep.subr.mxu0 0.0
    %700 = vmatpush1.msra.mxu0 0.0
    %701 = vmatprep.subr.mxu0 0.0
    %702 = vmatpush1.msra.mxu0 0.0
    %703 = vmatprep.subr.mxu0 0.0
    %704 = vmatpush1.msra.mxu0 0.0
    %705 = vmatprep.subr.mxu0 0.0
    %706 = vmatpush1.msra.mxu0 %v135
    %707 = vmatprep.subr.mxu0 0.0
    %708 = vmatpush1.msra.mxu0 %v134
    %709 = vmatprep.subr.mxu0 0.0
    %710 = vmatpush1.msra.mxu0 %v133
    %711 = vmatprep.subr.mxu0 0.0
    %712 = vmatpush1.msra.mxu0 %v132
    %713 = vmatprep.subr.mxu0 0.0
    %714 = vmatpush2.msra.mxu0 0.0
    %715 = vmatprep.subr.mxu0 0.0
    %716 = vmatpush2.msra.mxu0 0.0
    %717 = vmatprep.subr.mxu0 0.0
    %718 = vmatpush2.msra.mxu0 0.0
    %719 = vmatprep.subr.mxu0 0.0
    %720 = vmatpush2.msra.mxu0 0.0
    %721 = vmatprep.subr.mxu0 0.0
    %722 = vmatpush2.msra.mxu0 0.0
    %723 = vmatprep.subr.mxu0 0.0
    %724 = vmatpush2.msra.mxu0 0.0
    %725 = vmatprep.subr.mxu0 0.0
    %726 = vmatpush2.msra.mxu0 0.0
    %727 = vmatprep.subr.mxu0 0.0
    %728 = vmatpush2.msra.mxu0 0.0
    %729 = vmatprep.subr.mxu0 0.0
    %730 = vmatpush2.msra.mxu0 0.0
    %731 = vmatprep.subr.mxu0 0.0
    %732 = vmatpush2.msra.mxu0 0.0
    %733 = vmatprep.subr.mxu0 0.0
    %734 = vmatpush2.msra.mxu0 0.0
    %735 = vmatprep.subr.mxu0 0.0
    %736 = vmatpush2.msra.mxu0 0.0
    %737 = vmatprep.subr.mxu0 0.0
    %738 = vmatpush2.msra.mxu0 0.0
    %739 = vmatprep.subr.mxu0 0.0
    %740 = vmatpush2.msra.mxu0 0.0
    %741 = vmatprep.subr.mxu0 0.0
    %742 = vmatpush2.msra.mxu0 0.0
    %743 = vmatprep.subr.mxu0 0.0
    %744 = vmatpush2.msra.mxu0 0.0
    %745 = vmatprep.mubr.f32.mxu0 0.0
    %746 = vmatmul.mubr.f32.gmra.mxu0 %v679
    %v747 = vpop.f32.mrf.mxu0
    %v748 = vadd.f32 0.0, %v747
    %v749 = vpop.f32.mrf.mxu0
    %750 = vdwg.mxu0
    %v752 = vrot.slane %v748, 6
    %v754 = vadd.f32 %v129, %v752
    %v755 = vxor.u32 %v754, 2147483648
    %v756 = vmul.f32 %v755, 1.442695
    %v757 = vpow.pop %v756
    %v758 = vadd.f32 %v757, 1.0
    %v759 = vrcp.pop %v758
    %v760 = vmul.f32 1.0, %v759
    %v761 = vadd.f32 %v748, %v224
    %v763 = vrot.slane %v761, 6
    %764 = vrot.lane.b32.xlu0 %v763, 64
    %v765 = vpop.permute.xlu0 %764
    %v767 = vmul.f32 %v760, %v765
    %769 = vrot.lane.b32.xlu0 %v767, 64
    %v770 = vpop.permute.xlu0 %769
    %v772 = vadd.f32 %v129, %v770
    %v773 = vtanh.pop %v772
    %v774 = vsub.f32 1.0, %v760
    %776 = vrot.lane.b32.xlu0 %v773, 96
    %v777 = vpop.permute.xlu0 %776
    %v779 = vmul.f32 %v774, %v777
    %v780 = vrot.slane %v675, 6
    %v782 = vmul.f32 %v760, %v780
    %v783 = vadd.f32 %v779, %v782
    %v785 = vrot.slane %v783, 2
    %786 = vrot.lane.b32.xlu0 %v785, 96
    %v787 = vpop.permute.xlu0 %786
    %v788 = vsel %vm137, %v787, 0
    %790 = vmatprep.subr.mxu0 0.0
    %791 = vmatpush1.msra.mxu0 0.0
    %792 = vmatprep.subr.mxu0 0.0
    %793 = vmatpush1.msra.mxu0 0.0
    %794 = vmatprep.subr.mxu0 0.0
    %795 = vmatpush1.msra.mxu0 0.0
    %796 = vmatprep.subr.mxu0 0.0
    %797 = vmatpush1.msra.mxu0 0.0
    %798 = vmatprep.subr.mxu0 0.0
    %799 = vmatpush1.msra.mxu0 0.0
    %800 = vmatprep.subr.mxu0 0.0
    %801 = vmatpush1.msra.mxu0 0.0
    %802 = vmatprep.subr.mxu0 0.0
    %803 = vmatpush1.msra.mxu0 0.0
    %804 = vmatprep.subr.mxu0 0.0
    %805 = vmatpush1.msra.mxu0 0.0
    %806 = vmatprep.subr.mxu0 0.0
    %807 = vmatpush1.msra.mxu0 0.0
    %808 = vmatprep.subr.mxu0 0.0
    %809 = vmatpush1.msra.mxu0 0.0
    %810 = vmatprep.subr.mxu0 0.0
    %811 = vmatpush1.msra.mxu0 0.0
    %812 = vmatprep.subr.mxu0 0.0
    %813 = vmatpush1.msra.mxu0 0.0
    %814 = vmatprep.subr.mxu0 0.0
    %815 = vmatpush1.msra.mxu0 %v135
    %816 = vmatprep.subr.mxu0 0.0
    %817 = vmatpush1.msra.mxu0 %v134
    %818 = vmatprep.subr.mxu0 0.0
    %819 = vmatpush1.msra.mxu0 %v133
    %820 = vmatprep.subr.mxu0 0.0
    %821 = vmatpush1.msra.mxu0 %v132
    %822 = vmatprep.subr.mxu0 0.0
    %823 = vmatpush2.msra.mxu0 0.0
    %824 = vmatprep.subr.mxu0 0.0
    %825 = vmatpush2.msra.mxu0 0.0
    %826 = vmatprep.subr.mxu0 0.0
    %827 = vmatpush2.msra.mxu0 0.0
    %828 = vmatprep.subr.mxu0 0.0
    %829 = vmatpush2.msra.mxu0 0.0
    %830 = vmatprep.subr.mxu0 0.0
    %831 = vmatpush2.msra.mxu0 0.0
    %832 = vmatprep.subr.mxu0 0.0
    %833 = vmatpush2.msra.mxu0 0.0
    %834 = vmatprep.subr.mxu0 0.0
    %835 = vmatpush2.msra.mxu0 0.0
    %836 = vmatprep.subr.mxu0 0.0
    %837 = vmatpush2.msra.mxu0 0.0
    %838 = vmatprep.subr.mxu0 0.0
    %839 = vmatpush2.msra.mxu0 0.0
    %840 = vmatprep.subr.mxu0 0.0
    %841 = vmatpush2.msra.mxu0 0.0
    %842 = vmatprep.subr.mxu0 0.0
    %843 = vmatpush2.msra.mxu0 0.0
    %844 = vmatprep.subr.mxu0 0.0
    %845 = vmatpush2.msra.mxu0 0.0
    %846 = vmatprep.subr.mxu0 0.0
    %847 = vmatpush2.msra.mxu0 0.0
    %848 = vmatprep.subr.mxu0 0.0
    %849 = vmatpush2.msra.mxu0 0.0
    %850 = vmatprep.subr.mxu0 0.0
    %851 = vmatpush2.msra.mxu0 0.0
    %852 = vmatprep.subr.mxu0 0.0
    %853 = vmatpush2.msra.mxu0 0.0
    %854 = vmatprep.mubr.f32.mxu0 0.0
    %855 = vmatmul.mubr.f32.gmra.mxu0 %v788
    %v856 = vpop.f32.mrf.mxu0
    %v857 = vadd.f32 0.0, %v856
    %v858 = vpop.f32.mrf.mxu0
    %859 = vdwg.mxu0
    %v861 = vrot.slane %v857, 4
    %v863 = vadd.f32 %v129, %v861
    %v864 = vxor.u32 %v863, 2147483648
    %v865 = vmul.f32 %v864, 1.442695
    %v866 = vpow.pop %v865
    %v867 = vadd.f32 %v866, 1.0
    %v868 = vrcp.pop %v867
    %v869 = vmul.f32 1.0, %v868
    %v870 = vadd.f32 %v857, %v224
    %v872 = vrot.slane %v870, 4
    %873 = vrot.lane.b32.xlu0 %v872, 64
    %v874 = vpop.permute.xlu0 %873
    %v876 = vmul.f32 %v869, %v874
    %878 = vrot.lane.b32.xlu0 %v876, 64
    %v879 = vpop.permute.xlu0 %878
    %v881 = vadd.f32 %v129, %v879
    %v882 = vtanh.pop %v881
    %v883 = vsub.f32 1.0, %v869
    %885 = vrot.lane.b32.xlu0 %v882, 96
    %v886 = vpop.permute.xlu0 %885
    %v888 = vmul.f32 %v883, %v886
    %v889 = vrot.slane %v783, 6
    %v891 = vmul.f32 %v869, %v889
    %v892 = vadd.f32 %v888, %v891
    %v894 = vrot.slane %v892, 4
    %895 = vrot.lane.b32.xlu0 %v894, 96
    %v896 = vpop.permute.xlu0 %895
    %v897 = vsel %vm137, %v896, 0
    %899 = vmatprep.subr.mxu0 0.0
    %900 = vmatpush1.msra.mxu0 0.0
    %901 = vmatprep.subr.mxu0 0.0
    %902 = vmatpush1.msra.mxu0 0.0
    %903 = vmatprep.subr.mxu0 0.0
    %904 = vmatpush1.msra.mxu0 0.0
    %905 = vmatprep.subr.mxu0 0.0
    %906 = vmatpush1.msra.mxu0 0.0
    %907 = vmatprep.subr.mxu0 0.0
    %908 = vmatpush1.msra.mxu0 0.0
    %909 = vmatprep.subr.mxu0 0.0
    %910 = vmatpush1.msra.mxu0 0.0
    %911 = vmatprep.subr.mxu0 0.0
    %912 = vmatpush1.msra.mxu0 0.0
    %913 = vmatprep.subr.mxu0 0.0
    %914 = vmatpush1.msra.mxu0 0.0
    %915 = vmatprep.subr.mxu0 0.0
    %916 = vmatpush1.msra.mxu0 0.0
    %917 = vmatprep.subr.mxu0 0.0
    %918 = vmatpush1.msra.mxu0 0.0
    %919 = vmatprep.subr.mxu0 0.0
    %920 = vmatpush1.msra.mxu0 0.0
    %921 = vmatprep.subr.mxu0 0.0
    %922 = vmatpush1.msra.mxu0 0.0
    %923 = vmatprep.subr.mxu0 0.0
    %924 = vmatpush1.msra.mxu0 %v135
    %925 = vmatprep.subr.mxu0 0.0
    %926 = vmatpush1.msra.mxu0 %v134
    %927 = vmatprep.subr.mxu0 0.0
    %928 = vmatpush1.msra.mxu0 %v133
    %929 = vmatprep.subr.mxu0 0.0
    %930 = vmatpush1.msra.mxu0 %v132
    %931 = vmatprep.subr.mxu0 0.0
    %932 = vmatpush2.msra.mxu0 0.0
    %933 = vmatprep.subr.mxu0 0.0
    %934 = vmatpush2.msra.mxu0 0.0
    %935 = vmatprep.subr.mxu0 0.0
    %936 = vmatpush2.msra.mxu0 0.0
    %937 = vmatprep.subr.mxu0 0.0
    %938 = vmatpush2.msra.mxu0 0.0
    %939 = vmatprep.subr.mxu0 0.0
    %940 = vmatpush2.msra.mxu0 0.0
    %941 = vmatprep.subr.mxu0 0.0
    %942 = vmatpush2.msra.mxu0 0.0
    %943 = vmatprep.subr.mxu0 0.0
    %944 = vmatpush2.msra.mxu0 0.0
    %945 = vmatprep.subr.mxu0 0.0
    %946 = vmatpush2.msra.mxu0 0.0
    %947 = vmatprep.subr.mxu0 0.0
    %948 = vmatpush2.msra.mxu0 0.0
    %949 = vmatprep.subr.mxu0 0.0
    %950 = vmatpush2.msra.mxu0 0.0
    %951 = vmatprep.subr.mxu0 0.0
    %952 = vmatpush2.msra.mxu0 0.0
    %953 = vmatprep.subr.mxu0 0.0
    %954 = vmatpush2.msra.mxu0 0.0
    %955 = vmatprep.subr.mxu0 0.0
    %956 = vmatpush2.msra.mxu0 0.0
    %957 = vmatprep.subr.mxu0 0.0
    %958 = vmatpush2.msra.mxu0 0.0
    %959 = vmatprep.subr.mxu0 0.0
    %960 = vmatpush2.msra.mxu0 0.0
    %961 = vmatprep.subr.mxu0 0.0
    %962 = vmatpush2.msra.mxu0 0.0
    %963 = vmatprep.mubr.f32.mxu0 0.0
    %964 = vmatmul.mubr.f32.gmra.mxu0 %v897
    %v965 = vpop.f32.mrf.mxu0
    %v966 = vadd.f32 0.0, %v965
    %v967 = vpop.f32.mrf.mxu0
    %968 = vdwg.mxu0
    %v970 = vrot.slane %v966, 2
    %v972 = vadd.f32 %v129, %v970
    %v973 = vxor.u32 %v972, 2147483648
    %v974 = vmul.f32 %v973, 1.442695
    %v975 = vpow.pop %v974
    %v976 = vadd.f32 %v975, 1.0
    %v977 = vrcp.pop %v976
    %v978 = vmul.f32 1.0, %v977
    %v979 = vadd.f32 %v966, %v224
    %v981 = vrot.slane %v979, 2
    %982 = vrot.lane.b32.xlu0 %v981, 64
    %v983 = vpop.permute.xlu0 %982
    %v985 = vmul.f32 %v978, %v983
    %987 = vrot.lane.b32.xlu0 %v985, 64
    %v988 = vpop.permute.xlu0 %987
    %v990 = vadd.f32 %v129, %v988
    %v991 = vtanh.pop %v990
    %v992 = vsub.f32 1.0, %v978
    %994 = vrot.lane.b32.xlu0 %v991, 96
    %v995 = vpop.permute.xlu0 %994
    %v997 = vmul.f32 %v992, %v995
    %v998 = vrot.slane %v892, 6
    %v1000 = vmul.f32 %v978, %v998
    %v1001 = vadd.f32 %v997, %v1000
    %v1002 = vld [vmem:[%s5] sm:$0xff]
    %v1003 = vld [vmem:[%s5 + $0x8] sm:$0xff]
    %v1004 = vld [vmem:[%s5 + $0x10] sm:$0xff]
    %v1005 = vld [vmem:[%s5 + $0x18] sm:$0xff]
    %v1006 = vld [vmem:[%s6] sm:$0x1]
    %v1008 = vlaneseq
    %v1009 = vshrl.u32 %v1008, 7
    %v1010 = vsub.s32 0, %v1009
    %v1011 = vrot.slane %v1006, %v1010
    %v1014 = vrot.slane %v1001, 6
    %1015 = vrot.lane.b32.xlu0 %v1014, 96
    %v1016 = vpop.permute.xlu0 %1015
    %v1017 = vsel %vm137, %v1016, 0
    %1019 = vmatprep.subr.mxu0 0.0
    %1020 = vmatpush1.msra.mxu0 0.0
    %1021 = vmatprep.subr.mxu0 0.0
    %1022 = vmatpush1.msra.mxu0 0.0
    %1023 = vmatprep.subr.mxu0 0.0
    %1024 = vmatpush1.msra.mxu0 0.0
    %1025 = vmatprep.subr.mxu0 0.0
    %1026 = vmatpush1.msra.mxu0 0.0
    %1027 = vmatprep.subr.mxu0 0.0
    %1028 = vmatpush1.msra.mxu0 0.0
    %1029 = vmatprep.subr.mxu0 0.0
    %1030 = vmatpush1.msra.mxu0 0.0
    %1031 = vmatprep.subr.mxu0 0.0
    %1032 = vmatpush1.msra.mxu0 0.0
    %1033 = vmatprep.subr.mxu0 0.0
    %1034 = vmatpush1.msra.mxu0 0.0
    %1035 = vmatprep.subr.mxu0 0.0
    %1036 = vmatpush1.msra.mxu0 0.0
    %1037 = vmatprep.subr.mxu0 0.0
    %1038 = vmatpush1.msra.mxu0 0.0
    %1039 = vmatprep.subr.mxu0 0.0
    %1040 = vmatpush1.msra.mxu0 0.0
    %1041 = vmatprep.subr.mxu0 0.0
    %1042 = vmatpush1.msra.mxu0 0.0
    %1043 = vmatprep.subr.mxu0 0.0
    %1044 = vmatpush1.msra.mxu0 %v1005
    %1045 = vmatprep.subr.mxu0 0.0
    %1046 = vmatpush1.msra.mxu0 %v1004
    %1047 = vmatprep.subr.mxu0 0.0
    %1048 = vmatpush1.msra.mxu0 %v1003
    %1049 = vmatprep.subr.mxu0 0.0
    %1050 = vmatpush1.msra.mxu0 %v1002
    %1051 = vmatprep.subr.mxu0 0.0
    %1052 = vmatpush2.msra.mxu0 0.0
    %1053 = vmatprep.subr.mxu0 0.0
    %1054 = vmatpush2.msra.mxu0 0.0
    %1055 = vmatprep.subr.mxu0 0.0
    %1056 = vmatpush2.msra.mxu0 0.0
    %1057 = vmatprep.subr.mxu0 0.0
    %1058 = vmatpush2.msra.mxu0 0.0
    %1059 = vmatprep.subr.mxu0 0.0
    %1060 = vmatpush2.msra.mxu0 0.0
    %1061 = vmatprep.subr.mxu0 0.0
    %1062 = vmatpush2.msra.mxu0 0.0
    %1063 = vmatprep.subr.mxu0 0.0
    %1064 = vmatpush2.msra.mxu0 0.0
    %1065 = vmatprep.subr.mxu0 0.0
    %1066 = vmatpush2.msra.mxu0 0.0
    %1067 = vmatprep.subr.mxu0 0.0
    %1068 = vmatpush2.msra.mxu0 0.0
    %1069 = vmatprep.subr.mxu0 0.0
    %1070 = vmatpush2.msra.mxu0 0.0
    %1071 = vmatprep.subr.mxu0 0.0
    %1072 = vmatpush2.msra.mxu0 0.0
    %1073 = vmatprep.subr.mxu0 0.0
    %1074 = vmatpush2.msra.mxu0 0.0
    %1075 = vmatprep.subr.mxu0 0.0
    %1076 = vmatpush2.msra.mxu0 0.0
    %1077 = vmatprep.subr.mxu0 0.0
    %1078 = vmatpush2.msra.mxu0 0.0
    %1079 = vmatprep.subr.mxu0 0.0
    %1080 = vmatpush2.msra.mxu0 0.0
    %1081 = vmatprep.subr.mxu0 0.0
    %1082 = vmatpush2.msra.mxu0 0.0
    %1083 = vmatprep.mubr.f32.mxu0 0.0
    %1084 = vmatmul.mubr.f32.gmra.mxu0 %v1017
    %v1085 = vpop.f32.mrf.mxu0
    %v1086 = vadd.f32 %v1011, %v1085
    %v1087 = vpop.f32.mrf.mxu0
    %1088 = vdwg.mxu0
    %v1089 = vmax.f32 %v1086, 0.0
    %v1090 = vld [vmem:[%s7] sm:$0xff]
    %v1091 = vld [vmem:[%s7 + $0x8] sm:$0xff]
    %v1092 = vld [vmem:[%s7 + $0x10] sm:$0xff]
    %v1093 = vld [vmem:[%s7 + $0x18] sm:$0xff]
    %v1094 = vld [vmem:[%s7 + $0x20] sm:$0xff]
    %v1095 = vld [vmem:[%s7 + $0x28] sm:$0xff]
    %v1096 = vld [vmem:[%s7 + $0x30] sm:$0xff]
    %v1097 = vld [vmem:[%s7 + $0x38] sm:$0xff]
    %v1098 = vld [vmem:[%s8] sm:$0x1]
    %v1100 = vlaneseq
    %v1101 = vshrl.u32 %v1100, 7
    %v1102 = vsub.s32 0, %v1101
    %v1103 = vrot.slane %v1098, %v1102
    %vm1105 = vcmask 523264
    %v1107 = vsel %vm1105, %v1089, 0
    %1109 = vmatprep.subr.mxu0 0.0
    %1110 = vmatpush1.msra.mxu0 0.0
    %1111 = vmatprep.subr.mxu0 0.0
    %1112 = vmatpush1.msra.mxu0 0.0
    %1113 = vmatprep.subr.mxu0 0.0
    %1114 = vmatpush1.msra.mxu0 0.0
    %1115 = vmatprep.subr.mxu0 0.0
    %1116 = vmatpush1.msra.mxu0 0.0
    %1117 = vmatprep.subr.mxu0 0.0
    %1118 = vmatpush1.msra.mxu0 0.0
    %1119 = vmatprep.subr.mxu0 0.0
    %1120 = vmatpush1.msra.mxu0 0.0
    %1121 = vmatprep.subr.mxu0 0.0
    %1122 = vmatpush1.msra.mxu0 0.0
    %1123 = vmatprep.subr.mxu0 0.0
    %1124 = vmatpush1.msra.mxu0 0.0
    %1125 = vmatprep.subr.mxu0 0.0
    %1126 = vmatpush1.msra.mxu0 %v1097
    %1127 = vmatprep.subr.mxu0 0.0
    %1128 = vmatpush1.msra.mxu0 %v1096
    %1129 = vmatprep.subr.mxu0 0.0
    %1130 = vmatpush1.msra.mxu0 %v1095
    %1131 = vmatprep.subr.mxu0 0.0
    %1132 = vmatpush1.msra.mxu0 %v1094
    %1133 = vmatprep.subr.mxu0 0.0
    %1134 = vmatpush1.msra.mxu0 %v1093
    %1135 = vmatprep.subr.mxu0 0.0
    %1136 = vmatpush1.msra.mxu0 %v1092
    %1137 = vmatprep.subr.mxu0 0.0
    %1138 = vmatpush1.msra.mxu0 %v1091
    %1139 = vmatprep.subr.mxu0 0.0
    %1140 = vmatpush1.msra.mxu0 %v1090
    %1141 = vmatprep.subr.mxu0 0.0
    %1142 = vmatpush2.msra.mxu0 0.0
    %1143 = vmatprep.subr.mxu0 0.0
    %1144 = vmatpush2.msra.mxu0 0.0
    %1145 = vmatprep.subr.mxu0 0.0
    %1146 = vmatpush2.msra.mxu0 0.0
    %1147 = vmatprep.subr.mxu0 0.0
    %1148 = vmatpush2.msra.mxu0 0.0
    %1149 = vmatprep.subr.mxu0 0.0
    %1150 = vmatpush2.msra.mxu0 0.0
    %1151 = vmatprep.subr.mxu0 0.0
    %1152 = vmatpush2.msra.mxu0 0.0
    %1153 = vmatprep.subr.mxu0 0.0
    %1154 = vmatpush2.msra.mxu0 0.0
    %1155 = vmatprep.subr.mxu0 0.0
    %1156 = vmatpush2.msra.mxu0 0.0
    %1157 = vmatprep.subr.mxu0 0.0
    %1158 = vmatpush2.msra.mxu0 0.0
    %1159 = vmatprep.subr.mxu0 0.0
    %1160 = vmatpush2.msra.mxu0 0.0
    %1161 = vmatprep.subr.mxu0 0.0
    %1162 = vmatpush2.msra.mxu0 0.0
    %1163 = vmatprep.subr.mxu0 0.0
    %1164 = vmatpush2.msra.mxu0 0.0
    %1165 = vmatprep.subr.mxu0 0.0
    %1166 = vmatpush2.msra.mxu0 0.0
    %1167 = vmatprep.subr.mxu0 0.0
    %1168 = vmatpush2.msra.mxu0 0.0
    %1169 = vmatprep.subr.mxu0 0.0
    %1170 = vmatpush2.msra.mxu0 0.0
    %1171 = vmatprep.subr.mxu0 0.0
    %1172 = vmatpush2.msra.mxu0 0.0
    %1173 = vmatprep.mubr.f32.mxu0 0.0
    %1174 = vmatmul.mubr.f32.gmra.mxu0 %v1107
    %v1175 = vpop.f32.mrf.mxu0
    %v1176 = vadd.f32 %v1103, %v1175
    %v1177 = vpop.f32.mrf.mxu0
    %1178 = vdwg.mxu0
    %v1179 = vmax.f32 %v1176, 0.0
    %v1180 = vld [vmem:[%s9] sm:$0xff]
    %v1181 = vld [vmem:[%s9 + $0x8] sm:$0xff]
    %v1182 = vld [vmem:[%s9 + $0x10] sm:$0xff]
    %v1183 = vld [vmem:[%s9 + $0x18] sm:$0xff]
    %v1184 = vld [vmem:[%s10] sm:$0x1]
    %v1186 = vlaneseq
    %v1187 = vshrl.u32 %v1186, 7
    %v1188 = vsub.s32 0, %v1187
    %v1189 = vrot.slane %v1184, %v1188
    %v1192 = vsel %vm137, %v1179, 0
    %1194 = vmatprep.subr.mxu0 0.0
    %1195 = vmatpush1.msra.mxu0 0.0
    %1196 = vmatprep.subr.mxu0 0.0
    %1197 = vmatpush1.msra.mxu0 0.0
    %1198 = vmatprep.subr.mxu0 0.0
    %1199 = vmatpush1.msra.mxu0 0.0
    %1200 = vmatprep.subr.mxu0 0.0
    %1201 = vmatpush1.msra.mxu0 0.0
    %1202 = vmatprep.subr.mxu0 0.0
    %1203 = vmatpush1.msra.mxu0 0.0
    %1204 = vmatprep.subr.mxu0 0.0
    %1205 = vmatpush1.msra.mxu0 0.0
    %1206 = vmatprep.subr.mxu0 0.0
    %1207 = vmatpush1.msra.mxu0 0.0
    %1208 = vmatprep.subr.mxu0 0.0
    %1209 = vmatpush1.msra.mxu0 0.0
    %1210 = vmatprep.subr.mxu0 0.0
    %1211 = vmatpush1.msra.mxu0 0.0
    %1212 = vmatprep.subr.mxu0 0.0
    %1213 = vmatpush1.msra.mxu0 0.0
    %1214 = vmatprep.subr.mxu0 0.0
    %1215 = vmatpush1.msra.mxu0 0.0
    %1216 = vmatprep.subr.mxu0 0.0
    %1217 = vmatpush1.msra.mxu0 0.0
    %1218 = vmatprep.subr.mxu0 0.0
    %1219 = vmatpush1.msra.mxu0 %v1183
    %1220 = vmatprep.subr.mxu0 0.0
    %1221 = vmatpush1.msra.mxu0 %v1182
    %1222 = vmatprep.subr.mxu0 0.0
    %1223 = vmatpush1.msra.mxu0 %v1181
    %1224 = vmatprep.subr.mxu0 0.0
    %1225 = vmatpush1.msra.mxu0 %v1180
    %1226 = vmatprep.subr.mxu0 0.0
    %1227 = vmatpush2.msra.mxu0 0.0
    %1228 = vmatprep.subr.mxu0 0.0
    %1229 = vmatpush2.msra.mxu0 0.0
    %1230 = vmatprep.subr.mxu0 0.0
    %1231 = vmatpush2.msra.mxu0 0.0
    %1232 = vmatprep.subr.mxu0 0.0
    %1233 = vmatpush2.msra.mxu0 0.0
    %1234 = vmatprep.subr.mxu0 0.0
    %1235 = vmatpush2.msra.mxu0 0.0
    %1236 = vmatprep.subr.mxu0 0.0
    %1237 = vmatpush2.msra.mxu0 0.0
    %1238 = vmatprep.subr.mxu0 0.0
    %1239 = vmatpush2.msra.mxu0 0.0
    %1240 = vmatprep.subr.mxu0 0.0
    %1241 = vmatpush2.msra.mxu0 0.0
    %1242 = vmatprep.subr.mxu0 0.0
    %1243 = vmatpush2.msra.mxu0 0.0
    %1244 = vmatprep.subr.mxu0 0.0
    %1245 = vmatpush2.msra.mxu0 0.0
    %1246 = vmatprep.subr.mxu0 0.0
    %1247 = vmatpush2.msra.mxu0 0.0
    %1248 = vmatprep.subr.mxu0 0.0
    %1249 = vmatpush2.msra.mxu0 0.0
    %1250 = vmatprep.subr.mxu0 0.0
    %1251 = vmatpush2.msra.mxu0 0.0
    %1252 = vmatprep.subr.mxu0 0.0
    %1253 = vmatpush2.msra.mxu0 0.0
    %1254 = vmatprep.subr.mxu0 0.0
    %1255 = vmatpush2.msra.mxu0 0.0
    %1256 = vmatprep.subr.mxu0 0.0
    %1257 = vmatpush2.msra.mxu0 0.0
    %1258 = vmatprep.mubr.f32.mxu0 0.0
    %1259 = vmatmul.mubr.f32.gmra.mxu0 %v1192
    %v1260 = vpop.f32.mrf.mxu0
    %v1261 = vadd.f32 %v1189, %v1260
    %v1262 = vpop.f32.mrf.mxu0
    %1263 = vdwg.mxu0
    %vm1264 = vcmask 9216
    %1265 = vst.msk [vmem:[#allocation2] sm:$0x3] %vm1264, %v1261
    // Predicated region
    $region46: #{tpu_custom_call.1} parent=1 // pred_check
      _
    $region47: #{tpu_custom_call.1} parent=1 // pred_check_branch
      %1267 = sbr.rel (0) target = $region49
    $region48: #{tpu_custom_call.1} parent=1 // pred_region
      %s1269 = ssub.s32 32, 32
      %1270 = vsyncadd [#allocation3], %s1269
      %s1272 = sshll.u32 [#allocation2], 4
      %s1273 = int_to_ptr.vmem [resolvable:$true] %s1272
      %1275 = dma.vmem_to_hbm [thread:$0]  %s1273, 32, %s11, [#allocation3]
    $region49: #{tpu_custom_call.1} parent=1 // pred_fallthru
      _
    // Predicated region
    $region50: #{tpu_custom_call.1} parent=1 // pred_check
      _
    $region51: #{tpu_custom_call.1} parent=1 // pred_check_branch
      %1277 = sbr.rel (0) target = $region53
    $region52: #{tpu_custom_call.1} parent=1 // pred_region
      %1278 = dma.done [#allocation3], 32
    $region53: #{tpu_custom_call.1} parent=1 // pred_fallthru
      _
    %1279 = vsyncpa [#allocation3], 1

</llo_original>
